<compile_context>
chip_gen: v6e
topology: v6e:2x2x1
jax: 0.10.0
libtpu: 0.0.40
codegen_flags: <defaults>
</compile_context>

<pallas_src>
import functools
from typing import NamedTuple

import numpy as np
import jax
import jax.numpy as jnp
from jax import lax
from jax.experimental import pallas as pl
from jax.experimental.pallas import tpu as pltpu

_EPS = 1e-5  # PyTorch BatchNorm2d default


class BlockCfg(NamedTuple):
    H: int
    W: int
    Cin: int
    Cout: int
    stride: int
    nb: int            # images folded into the matmul M dimension per step
    projection: bool   # 1x1 conv + BN shortcut (stride != 1 or Cin != Cout)


def _out_dim(n, stride):
    return (n - 1) // stride + 1


# ---------------------------------------------------------------------------
# Host-side (trace-time) weight preparation: done ONCE per parameter set,
# outside the jitted forward (review: do not rebuild bands every call).
# ---------------------------------------------------------------------------
def _fold_bn(bn):
    scale = bn["gamma"] / jnp.sqrt(bn["var"] + _EPS)
    bias = bn["beta"] - bn["mean"] * scale
    return scale, bias


def _conv3_band(w_hwio, W, stride=1):
    """Banded RHS for a pad-1 3x3 conv on the row-flattened (rows, W*Cin)
    layout.  band[kh][(s*wo + kw - 1)*Cin + c, wo*Cout + o] = w[kh, kw, c, o];
    missing taps at the left/right edge implement the width zero-padding and
    the W-stride is folded directly into the output columns."""
    w = np.asarray(w_hwio, np.float32)
    KH, KW, Ci, Co = w.shape
    Wo = _out_dim(W, stride)
    band = np.zeros((KH, W * Ci, Wo * Co), np.float32)
    for kh in range(KH):
        for kw in range(KW):
            for wo in range(Wo):
                wi = stride * wo + kw - 1
                if 0 <= wi < W:
                    band[kh, wi * Ci:(wi + 1) * Ci, wo * Co:(wo + 1) * Co] += w[kh, kw]
    return jnp.asarray(band)


def _conv1_band(w_io, W, stride=1):
    """Block-diagonal RHS for a (strided) 1x1 conv on the flattened layout."""
    w = np.asarray(w_io, np.float32)
    Ci, Co = w.shape
    Wo = _out_dim(W, stride)
    band = np.zeros((W * Ci, Wo * Co), np.float32)
    for wo in range(Wo):
        wi = stride * wo
        band[wi * Ci:(wi + 1) * Ci, wo * Co:(wo + 1) * Co] = w
    return jnp.asarray(band)


def _shift_mats(nb, H):
    """0/1 row-shift matrices for the kh = 0 / kh = 2 taps with per-image
    top/bottom zero padding (selection matmuls on bf16 data are exact)."""
    M = nb * H
    dn = np.zeros((M, M), np.float32)   # dn @ x  -> row r holds x[r-1]
    up = np.zeros((M, M), np.float32)   # up @ x  -> row r holds x[r+1]
    for r in range(M):
        if r % H != 0:
            dn[r, r - 1] = 1.0
        if r % H != H - 1:
            up[r, r + 1] = 1.0
    return jnp.asarray(dn, jnp.bfloat16), jnp.asarray(up, jnp.bfloat16)


def _row_select(nb, H, stride):
    """0/1 matrix selecting rows h = stride*ho of each image (H-stride)."""
    Ho = _out_dim(H, stride)
    rs = np.zeros((Ho, H), np.float32)
    rs[np.arange(Ho), stride * np.arange(Ho)] = 1.0
    full = np.kron(np.eye(nb, dtype=np.float32), rs)
    return jnp.asarray(full, jnp.bfloat16)


def _pick_images_per_step(N, H, Ho, target_rows=256):
    """Largest divisor of N whose row-block fits the MXU M target (and keeps
    the sublane dim a multiple of 8 when the block is not the full array)."""
    valid = [d for d in range(1, N + 1)
             if N % d == 0 and (d == N or ((d * H) % 8 == 0 and (d * Ho) % 8 == 0))]
    fitting = [d for d in valid if d * H <= target_rows]
    return max(fitting) if fitting else min(valid)


def prepare_basic_block(params, *, batch, height, width, stride=1,
                        images_per_step=None):
    H, W, N, s = height, width, batch, stride
    Ci, Co = params["w1"].shape[2], params["w1"].shape[3]
    Ho, Wo = _out_dim(H, s), _out_dim(W, s)
    projection = (s != 1) or (Ci != Co)
    nb = images_per_step if images_per_step is not None else \
        _pick_images_per_step(N, H, Ho)
    if N % nb:
        raise ValueError(f"images_per_step={nb} must divide batch={N}")

    s1, b1 = _fold_bn(params["bn1"])
    s2, b2 = _fold_bn(params["bn2"])

    w = {
        "band1": _conv3_band(params["w1"] * s1, W, s).astype(jnp.bfloat16),
        "bias1": jnp.tile(b1, (Wo,)).reshape(1, Wo * Co).astype(jnp.float32),
        "band2": _conv3_band(params["w2"] * s2, Wo, 1).astype(jnp.bfloat16),
    }
    bias2 = jnp.tile(b2, (Wo,)).reshape(1, Wo * Co)
    if projection:
        ss, bs = _fold_bn(params["bn_sc"])
        w["wsc"] = _conv1_band(params["w_sc"] * ss, W, s).astype(jnp.bfloat16)
        bias2 = bias2 + jnp.tile(bs, (Wo,)).reshape(1, Wo * Co)
    w["bias2"] = bias2.astype(jnp.float32)

    w["sdn1"], w["sup1"] = _shift_mats(nb, H)
    if s != 1:
        w["rsel"] = _row_select(nb, H, s)
        w["sdn2"], w["sup2"] = _shift_mats(nb, Ho)

    cfg = BlockCfg(H=H, W=W, Cin=Ci, Cout=Co, stride=s, nb=nb,
                   projection=projection)
    return w, cfg


# ---------------------------------------------------------------------------
# The fused kernel: conv1+bn1+relu -> (row select) -> conv2+bn2 + shortcut
# + residual + relu.  All matmuls bf16 x bf16 with f32 accumulation; all
# epilogue math in f32; no VMEM scratch, no in-kernel copies.
# ---------------------------------------------------------------------------
def _make_fused_kernel(projection, strided):
    def kernel(x_ref, band1_ref, bias1_ref, band2_ref, bias2_ref,
               sdn1_ref, sup1_ref, *rest):
        rest = list(rest)
        if strided:
            rsel_ref, sdn2_ref, sup2_ref = rest[:3]
            rest = rest[3:]
        if projection:
            wsc_ref = rest[0]
            rest = rest[1:]
        (out_ref,) = rest

        f32, bf16 = jnp.float32, jnp.bfloat16

        # ---- stage 1: conv1 + folded bn1 + ReLU --------------------------
        x = x_ref[...]                                             # (M1, W*Ci)
        x_dn = jnp.dot(sdn1_ref[...], x, preferred_element_type=f32).astype(bf16)
        x_up = jnp.dot(sup1_ref[...], x, preferred_element_type=f32).astype(bf16)

        h = jnp.dot(x, band1_ref[1], preferred_element_type=f32)
        h = h + jnp.dot(x_dn, band1_ref[0], preferred_element_type=f32)
        h = h + jnp.dot(x_up, band1_ref[2], preferred_element_type=f32)
        h = jnp.maximum(h + bias1_ref[...], 0.0).astype(bf16)      # (M1, Wo*Co)

        # ---- H-stride row selection + shortcut ---------------------------
        if strided:
            rsel = rsel_ref[...]                                   # (M2, M1)
            h = jnp.dot(rsel, h, preferred_element_type=f32).astype(bf16)
            xs = jnp.dot(rsel, x, preferred_element_type=f32).astype(bf16)
            sdn2, sup2 = sdn2_ref[...], sup2_ref[...]
        else:
            xs = x
            sdn2, sup2 = sdn1_ref[...], sup1_ref[...]

        if projection:
            sc = jnp.dot(xs, wsc_ref[...], preferred_element_type=f32)
        else:
            sc = xs.astype(f32)                                    # identity

        # ---- stage 2: conv2 + folded bn2 + residual + ReLU ----------------
        h_dn = jnp.dot(sdn2, h, preferred_element_type=f32).astype(bf16)
        h_up = jnp.dot(sup2, h, preferred_element_type=f32).astype(bf16)

        o = jnp.dot(h, band2_ref[1], preferred_element_type=f32)
        o = o + jnp.dot(h_dn, band2_ref[0], preferred_element_type=f32)
        o = o + jnp.dot(h_up, band2_ref[2], preferred_element_type=f32)
        o = o + bias2_ref[...] + sc
        out_ref[...] = jnp.maximum(o, 0.0).astype(out_ref.dtype)

    return kernel


def _const_spec(a):
    return pl.BlockSpec(a.shape, lambda g, _n=a.ndim: (0,) * _n)


def _fused_block_call(x_flat, w, cfg, N):
    H, W, Ci, Co, s, nb = cfg.H, cfg.W, cfg.Cin, cfg.Cout, cfg.stride, cfg.nb
    Ho, Wo = _out_dim(H, s), _out_dim(W, s)
    WCi, WCo = W * Ci, Wo * Co
    M1, M2 = nb * H, nb * Ho
    strided, projection = (s != 1), cfg.projection
    if N % nb:
        raise ValueError("batch does not match the prepared images_per_step")
    grid = (N // nb,)

    args = [x_flat, w["band1"], w["bias1"], w["band2"], w["bias2"],
            w["sdn1"], w["sup1"]]
    in_specs = [pl.BlockSpec((M1, WCi), lambda g: (g, 0))]
    in_specs += [_const_spec(a) for a in args[1:]]
    if strided:
        extra = [w["rsel"], w["sdn2"], w["sup2"]]
        args += extra
        in_specs += [_const_spec(a) for a in extra]
    if projection:
        args.append(w["wsc"])
        in_specs.append(_const_spec(w["wsc"]))

    return pl.pallas_call(
        _make_fused_kernel(projection, strided),
        out_shape=jax.ShapeDtypeStruct((N * Ho, WCo), jnp.bfloat16),
        grid=grid,
        in_specs=in_specs,
        out_specs=pl.BlockSpec((M2, WCo), lambda g: (g, 0)),
        compiler_params=pltpu.CompilerParams(
            dimension_semantics=("parallel",),
            vmem_limit_bytes=32 * 1024 * 1024),
    )(*args)


# ---------------------------------------------------------------------------
# Forward entry points.
# ---------------------------------------------------------------------------
def basic_block_forward_nhwc(x_nhwc, weights, *, cfg):
    """NHWC in / NHWC out — preferred in-network entry (no layout transposes)."""
    N, H, W, Ci = x_nhwc.shape
    assert (H, W, Ci) == (cfg.H, cfg.W, cfg.Cin), (x_nhwc.shape, cfg)
    x_flat = x_nhwc.astype(jnp.bfloat16).reshape(N * H, W * Ci)  # free reshape
    out_flat = _fused_block_call(x_flat, weights, cfg, N)
    Ho, Wo = _out_dim(H, cfg.stride), _out_dim(W, cfg.stride)
    return out_flat.reshape(N, Ho, Wo, cfg.Cout)


def basic_block_forward_nchw(x_nchw, weights, *, cfg):
    """Drop-in parity with the PyTorch module (NCHW); transposes are boundary
    glue only — use the NHWC entry point inside a network."""
    x_nhwc = jnp.transpose(x_nchw, (0, 2, 3, 1))
    out = basic_block_forward_nhwc(x_nhwc, weights, cfg=cfg)
    return jnp.transpose(out, (0, 3, 1, 2))


# ---------------------------------------------------------------------------
# Deterministic parameter init (HWIO conv weights, eval-mode BN stats).
# ---------------------------------------------------------------------------
def init_params(key, cin, cout, stride):
    ks = jax.random.split(key, 6)

    def bn_params(k):
        k1, k2, k3, k4 = jax.random.split(k, 4)
        return dict(
            gamma=jax.random.uniform(k1, (cout,), jnp.float32, 0.5, 1.5),
            beta=jax.random.normal(k2, (cout,), jnp.float32) * 0.1,
            mean=jax.random.normal(k3, (cout,), jnp.float32) * 0.1,
            var=jax.random.uniform(k4, (cout,), jnp.float32, 0.5, 1.5),
        )

    params = {
        "w1": jax.random.normal(ks[0], (3, 3, cin, cout), jnp.float32) * 0.1,
        "bn1": bn_params(ks[1]),
        "w2": jax.random.normal(ks[2], (3, 3, cout, cout), jnp.float32) * 0.1,
        "bn2": bn_params(ks[3]),
    }
    if stride != 1 or cin != cout:
        params["w_sc"] = jax.random.normal(ks[4], (cin, cout), jnp.float32) * 0.1
        params["bn_sc"] = bn_params(ks[5])
    return params


# ---------------------------------------------------------------------------
# Pure-JAX reference mirroring the kernel numerics (bf16 matmul operands,
# f32 accumulation, bf16 inter-conv activation + residual, eval-mode BN).
# ---------------------------------------------------------------------------
def reference_forward(x_nchw, params, stride=1):
    f32, bf16 = jnp.float32, jnp.bfloat16
    Cin = x_nchw.shape[1]
    Cout = params["w1"].shape[-1]

    def conv(x, w_hwio, s, pad):
        return lax.conv_general_dilated(
            x, w_hwio, (s, s), ((pad, pad), (pad, pad)),
            dimension_numbers=("NCHW", "HWIO", "NCHW"),
            preferred_element_type=f32)

    s1, b1 = _fold_bn(params["bn1"])
    s2, b2 = _fold_bn(params["bn2"])
    xb = x_nchw.astype(bf16)

    h = jax.nn.relu(conv(xb, (params["w1"] * s1).astype(bf16), stride, 1)
                    + b1[None, :, None, None])
    h = h.astype(bf16)                       # kernel keeps activation in bf16
    main = conv(h, (params["w2"] * s2).astype(bf16), 1, 1) + b2[None, :, None, None]
    if stride != 1 or Cin != Cout:
        ss, bs = _fold_bn(params["bn_sc"])
        sc = conv(xb, (params["w_sc"] * ss).astype(bf16)[None, None], stride, 0) \
            + bs[None, :, None, None]
    else:
        sc = xb.astype(f32)                  # identity residual (bf16 data)
    return jax.nn.relu(main + sc)


if __name__ == "__main__":
    configs = [
        # (N, Cin, Cout, H, W, stride)
        (2, 8, 16, 16, 16, 1),   # projection shortcut (Cin != Cout)
        (2, 16, 16, 16, 16, 1),  # identity shortcut
        (2, 8, 16, 16, 16, 2),   # stride-2 + projection shortcut
    ]
    key = jax.random.PRNGKey(0)
    for (N, Cin, Cout, H, W, stride) in configs:
        key, kx, kp = jax.random.split(key, 3)
        x = jax.random.normal(kx, (N, Cin, H, W), jnp.float32)
        params = init_params(kp, Cin, Cout, stride)

        # weights (bands / biases / shift mats) are prepared ONCE, outside jit
        weights, cfg = prepare_basic_block(params, batch=N, height=H, width=W,
                                           stride=stride)
        fwd = jax.jit(functools.partial(basic_block_forward_nchw, cfg=cfg))
        out = jax.block_until_ready(fwd(x, weights))

        ref = reference_forward(x, params, stride)
        Ho, Wo = _out_dim(H, stride), _out_dim(W, stride)
        assert out.shape == (N, Cout, Ho, Wo), out.shape
        out_f32 = out.astype(jnp.float32)
        err = float(jnp.max(jnp.abs(out_f32 - ref)))
        assert jnp.allclose(out_f32, ref, atol=5e-2, rtol=5e-2), err
    print("KERNEL_OK")
</pallas_src>

<mosaic_0001>
module attributes {stable_mosaic.version = 11 : i64} {
  func.func @kernel(%arg0: i32, %arg1: memref<32x128xbf16, #tpu.memory_space<vmem>>, %arg2: memref<3x128x256xbf16, #tpu.memory_space<vmem>>, %arg3: memref<1x256xf32, #tpu.memory_space<vmem>>, %arg4: memref<3x256x256xbf16, #tpu.memory_space<vmem>>, %arg5: memref<1x256xf32, #tpu.memory_space<vmem>>, %arg6: memref<32x32xbf16, #tpu.memory_space<vmem>>, %arg7: memref<32x32xbf16, #tpu.memory_space<vmem>>, %arg8: memref<128x256xbf16, #tpu.memory_space<vmem>>, %arg9: memref<32x256xbf16, #tpu.memory_space<vmem>>) attributes {dimension_semantics = [#tpu.dimension_semantics<parallel>], iteration_bounds = array<i64: 1>, scalar_prefetch = 0 : i64, scratch_operands = 0 : i64, tpu.core_type = #tpu.core_type<tc>, window_params = [{transform_indices = @transform_0, window_bounds = array<i64: 32, 128>}, {pipeline_mode = #tpu.pipeline_mode<synchronous>, transform_indices = @transform_1, window_bounds = array<i64: 3, 128, 256>}, {pipeline_mode = #tpu.pipeline_mode<synchronous>, transform_indices = @transform_2, window_bounds = array<i64: 1, 256>}, {pipeline_mode = #tpu.pipeline_mode<synchronous>, transform_indices = @transform_3, window_bounds = array<i64: 3, 256, 256>}, {pipeline_mode = #tpu.pipeline_mode<synchronous>, transform_indices = @transform_4, window_bounds = array<i64: 1, 256>}, {pipeline_mode = #tpu.pipeline_mode<synchronous>, transform_indices = @transform_5, window_bounds = array<i64: 32, 32>}, {pipeline_mode = #tpu.pipeline_mode<synchronous>, transform_indices = @transform_6, window_bounds = array<i64: 32, 32>}, {pipeline_mode = #tpu.pipeline_mode<synchronous>, transform_indices = @transform_7, window_bounds = array<i64: 128, 256>}, {transform_indices = @transform_8, window_bounds = array<i64: 32, 256>}]} {
    %c0 = arith.constant 0 : index
    %c0_0 = arith.constant 0 : index
    %0 = vector.load %arg1[%c0, %c0_0] : memref<32x128xbf16, #tpu.memory_space<vmem>>, vector<32x128xbf16>
    %c0_1 = arith.constant 0 : index
    %c0_2 = arith.constant 0 : index
    %1 = vector.load %arg6[%c0_1, %c0_2] : memref<32x32xbf16, #tpu.memory_space<vmem>>, vector<32x32xbf16>
    %cst = arith.constant dense<0.000000e+00> : vector<32x128xf32>
    %2 = tpu.matmul %1, %0, %cst {dimension_numbers = #tpu.dot_dimension_numbers<[1], [0], [0], [1], [0, 0, 1, 1], [], []>} : vector<32x32xbf16>, vector<32x128xbf16>, vector<32x128xf32> -> vector<32x128xf32>
    %3 = arith.truncf %2 : vector<32x128xf32> to vector<32x128xbf16>
    %c0_3 = arith.constant 0 : index
    %c0_4 = arith.constant 0 : index
    %4 = vector.load %arg7[%c0_3, %c0_4] : memref<32x32xbf16, #tpu.memory_space<vmem>>, vector<32x32xbf16>
    %cst_5 = arith.constant dense<0.000000e+00> : vector<32x128xf32>
    %5 = tpu.matmul %4, %0, %cst_5 {dimension_numbers = #tpu.dot_dimension_numbers<[1], [0], [0], [1], [0, 0, 1, 1], [], []>} : vector<32x32xbf16>, vector<32x128xbf16>, vector<32x128xf32> -> vector<32x128xf32>
    %6 = arith.truncf %5 : vector<32x128xf32> to vector<32x128xbf16>
    %c1 = arith.constant 1 : index
    %c0_6 = arith.constant 0 : index
    %c0_7 = arith.constant 0 : index
    %7 = vector.load %arg2[%c1, %c0_6, %c0_7] : memref<3x128x256xbf16, #tpu.memory_space<vmem>>, vector<1x128x256xbf16>
    %8 = vector.shape_cast %7 : vector<1x128x256xbf16> to vector<128x256xbf16>
    %cst_8 = arith.constant dense<0.000000e+00> : vector<32x256xf32>
    %9 = tpu.matmul %0, %8, %cst_8 {dimension_numbers = #tpu.dot_dimension_numbers<[1], [0], [0], [1], [0, 0, 1, 1], [], []>} : vector<32x128xbf16>, vector<128x256xbf16>, vector<32x256xf32> -> vector<32x256xf32>
    %c0_9 = arith.constant 0 : index
    %c0_10 = arith.constant 0 : index
    %c0_11 = arith.constant 0 : index
    %10 = vector.load %arg2[%c0_9, %c0_10, %c0_11] : memref<3x128x256xbf16, #tpu.memory_space<vmem>>, vector<1x128x256xbf16>
    %11 = vector.shape_cast %10 : vector<1x128x256xbf16> to vector<128x256xbf16>
    %cst_12 = arith.constant dense<0.000000e+00> : vector<32x256xf32>
    %12 = tpu.matmul %3, %11, %cst_12 {dimension_numbers = #tpu.dot_dimension_numbers<[1], [0], [0], [1], [0, 0, 1, 1], [], []>} : vector<32x128xbf16>, vector<128x256xbf16>, vector<32x256xf32> -> vector<32x256xf32>
    %13 = arith.addf %9, %12 : vector<32x256xf32>
    %c2 = arith.constant 2 : index
    %c0_13 = arith.constant 0 : index
    %c0_14 = arith.constant 0 : index
    %14 = vector.load %arg2[%c2, %c0_13, %c0_14] : memref<3x128x256xbf16, #tpu.memory_space<vmem>>, vector<1x128x256xbf16>
    %15 = vector.shape_cast %14 : vector<1x128x256xbf16> to vector<128x256xbf16>
    %cst_15 = arith.constant dense<0.000000e+00> : vector<32x256xf32>
    %16 = tpu.matmul %6, %15, %cst_15 {dimension_numbers = #tpu.dot_dimension_numbers<[1], [0], [0], [1], [0, 0, 1, 1], [], []>} : vector<32x128xbf16>, vector<128x256xbf16>, vector<32x256xf32> -> vector<32x256xf32>
    %17 = arith.addf %13, %16 : vector<32x256xf32>
    %c0_16 = arith.constant 0 : index
    %c0_17 = arith.constant 0 : index
    %18 = vector.load %arg3[%c0_16, %c0_17] : memref<1x256xf32, #tpu.memory_space<vmem>>, vector<1x256xf32>
    %19 = vector.broadcast %18 : vector<1x256xf32> to vector<32x256xf32>
    %20 = arith.addf %17, %19 : vector<32x256xf32>
    %cst_18 = arith.constant 0.000000e+00 : f32
    %21 = vector.broadcast %cst_18 : f32 to vector<32x256xf32>
    %22 = arith.maximumf %20, %21 : vector<32x256xf32>
    %23 = arith.truncf %22 : vector<32x256xf32> to vector<32x256xbf16>
    %c0_19 = arith.constant 0 : index
    %c0_20 = arith.constant 0 : index
    %24 = vector.load %arg6[%c0_19, %c0_20] : memref<32x32xbf16, #tpu.memory_space<vmem>>, vector<32x32xbf16>
    %c0_21 = arith.constant 0 : index
    %c0_22 = arith.constant 0 : index
    %25 = vector.load %arg7[%c0_21, %c0_22] : memref<32x32xbf16, #tpu.memory_space<vmem>>, vector<32x32xbf16>
    %c0_23 = arith.constant 0 : index
    %c0_24 = arith.constant 0 : index
    %26 = vector.load %arg8[%c0_23, %c0_24] : memref<128x256xbf16, #tpu.memory_space<vmem>>, vector<128x256xbf16>
    %cst_25 = arith.constant dense<0.000000e+00> : vector<32x256xf32>
    %27 = tpu.matmul %0, %26, %cst_25 {dimension_numbers = #tpu.dot_dimension_numbers<[1], [0], [0], [1], [0, 0, 1, 1], [], []>} : vector<32x128xbf16>, vector<128x256xbf16>, vector<32x256xf32> -> vector<32x256xf32>
    %cst_26 = arith.constant dense<0.000000e+00> : vector<32x256xf32>
    %28 = tpu.matmul %24, %23, %cst_26 {dimension_numbers = #tpu.dot_dimension_numbers<[1], [0], [0], [1], [0, 0, 1, 1], [], []>} : vector<32x32xbf16>, vector<32x256xbf16>, vector<32x256xf32> -> vector<32x256xf32>
    %29 = arith.truncf %28 : vector<32x256xf32> to vector<32x256xbf16>
    %cst_27 = arith.constant dense<0.000000e+00> : vector<32x256xf32>
    %30 = tpu.matmul %25, %23, %cst_27 {dimension_numbers = #tpu.dot_dimension_numbers<[1], [0], [0], [1], [0, 0, 1, 1], [], []>} : vector<32x32xbf16>, vector<32x256xbf16>, vector<32x256xf32> -> vector<32x256xf32>
    %31 = arith.truncf %30 : vector<32x256xf32> to vector<32x256xbf16>
    %c1_28 = arith.constant 1 : index
    %c0_29 = arith.constant 0 : index
    %c0_30 = arith.constant 0 : index
    %32 = vector.load %arg4[%c1_28, %c0_29, %c0_30] : memref<3x256x256xbf16, #tpu.memory_space<vmem>>, vector<1x256x256xbf16>
    %33 = vector.shape_cast %32 : vector<1x256x256xbf16> to vector<256x256xbf16>
    %cst_31 = arith.constant dense<0.000000e+00> : vector<32x256xf32>
    %34 = tpu.matmul %23, %33, %cst_31 {dimension_numbers = #tpu.dot_dimension_numbers<[1], [0], [0], [1], [0, 0, 1, 1], [], []>} : vector<32x256xbf16>, vector<256x256xbf16>, vector<32x256xf32> -> vector<32x256xf32>
    %c0_32 = arith.constant 0 : index
    %c0_33 = arith.constant 0 : index
    %c0_34 = arith.constant 0 : index
    %35 = vector.load %arg4[%c0_32, %c0_33, %c0_34] : memref<3x256x256xbf16, #tpu.memory_space<vmem>>, vector<1x256x256xbf16>
    %36 = vector.shape_cast %35 : vector<1x256x256xbf16> to vector<256x256xbf16>
    %cst_35 = arith.constant dense<0.000000e+00> : vector<32x256xf32>
    %37 = tpu.matmul %29, %36, %cst_35 {dimension_numbers = #tpu.dot_dimension_numbers<[1], [0], [0], [1], [0, 0, 1, 1], [], []>} : vector<32x256xbf16>, vector<256x256xbf16>, vector<32x256xf32> -> vector<32x256xf32>
    %38 = arith.addf %34, %37 : vector<32x256xf32>
    %c2_36 = arith.constant 2 : index
    %c0_37 = arith.constant 0 : index
    %c0_38 = arith.constant 0 : index
    %39 = vector.load %arg4[%c2_36, %c0_37, %c0_38] : memref<3x256x256xbf16, #tpu.memory_space<vmem>>, vector<1x256x256xbf16>
    %40 = vector.shape_cast %39 : vector<1x256x256xbf16> to vector<256x256xbf16>
    %cst_39 = arith.constant dense<0.000000e+00> : vector<32x256xf32>
    %41 = tpu.matmul %31, %40, %cst_39 {dimension_numbers = #tpu.dot_dimension_numbers<[1], [0], [0], [1], [0, 0, 1, 1], [], []>} : vector<32x256xbf16>, vector<256x256xbf16>, vector<32x256xf32> -> vector<32x256xf32>
    %42 = arith.addf %38, %41 : vector<32x256xf32>
    %c0_40 = arith.constant 0 : index
    %c0_41 = arith.constant 0 : index
    %43 = vector.load %arg5[%c0_40, %c0_41] : memref<1x256xf32, #tpu.memory_space<vmem>>, vector<1x256xf32>
    %44 = vector.broadcast %43 : vector<1x256xf32> to vector<32x256xf32>
    %45 = arith.addf %42, %44 : vector<32x256xf32>
    %46 = arith.addf %45, %27 : vector<32x256xf32>
    %cst_42 = arith.constant 0.000000e+00 : f32
    %47 = vector.broadcast %cst_42 : f32 to vector<32x256xf32>
    %48 = arith.maximumf %46, %47 : vector<32x256xf32>
    %49 = arith.truncf %48 : vector<32x256xf32> to vector<32x256xbf16>
    %c0_43 = arith.constant 0 : index
    %c0_44 = arith.constant 0 : index
    %50 = vector.load %arg9[%c0_43, %c0_44] : memref<32x256xbf16, #tpu.memory_space<vmem>>, vector<32x256xbf16>
    tpu.vector_store %arg9[%c0_43, %c0_44], %49 {strides = array<i32>} : memref<32x256xbf16, #tpu.memory_space<vmem>>, vector<32x256xbf16>,
    return
  }
  func.func @transform_0(%arg0: i32) -> (i32, i32) {
    %c0_i32 = arith.constant 0 : i32
    %c0_i32_0 = arith.constant 0 : i32
    return %arg0, %c0_i32 : i32, i32
  }
  func.func @transform_1(%arg0: i32) -> (i32, i32, i32) {
    %c0_i32 = arith.constant 0 : i32
    %c0_i32_0 = arith.constant 0 : i32
    %c0_i32_1 = arith.constant 0 : i32
    %c0_i32_2 = arith.constant 0 : i32
    return %c0_i32, %c0_i32_0, %c0_i32_1 : i32, i32, i32
  }
  func.func @transform_2(%arg0: i32) -> (i32, i32) {
    %c0_i32 = arith.constant 0 : i32
    %c0_i32_0 = arith.constant 0 : i32
    %c0_i32_1 = arith.constant 0 : i32
    return %c0_i32, %c0_i32_0 : i32, i32
  }
  func.func @transform_3(%arg0: i32) -> (i32, i32, i32) {
    %c0_i32 = arith.constant 0 : i32
    %c0_i32_0 = arith.constant 0 : i32
    %c0_i32_1 = arith.constant 0 : i32
    %c0_i32_2 = arith.constant 0 : i32
    return %c0_i32, %c0_i32_0, %c0_i32_1 : i32, i32, i32
  }
  func.func @transform_4(%arg0: i32) -> (i32, i32) {
    %c0_i32 = arith.constant 0 : i32
    %c0_i32_0 = arith.constant 0 : i32
    %c0_i32_1 = arith.constant 0 : i32
    return %c0_i32, %c0_i32_0 : i32, i32
  }
  func.func @transform_5(%arg0: i32) -> (i32, i32) {
    %c0_i32 = arith.constant 0 : i32
    %c0_i32_0 = arith.constant 0 : i32
    %c0_i32_1 = arith.constant 0 : i32
    return %c0_i32, %c0_i32_0 : i32, i32
  }
  func.func @transform_6(%arg0: i32) -> (i32, i32) {
    %c0_i32 = arith.constant 0 : i32
    %c0_i32_0 = arith.constant 0 : i32
    %c0_i32_1 = arith.constant 0 : i32
    return %c0_i32, %c0_i32_0 : i32, i32
  }
  func.func @transform_7(%arg0: i32) -> (i32, i32) {
    %c0_i32 = arith.constant 0 : i32
    %c0_i32_0 = arith.constant 0 : i32
    %c0_i32_1 = arith.constant 0 : i32
    return %c0_i32, %c0_i32_0 : i32, i32
  }
  func.func @transform_8(%arg0: i32) -> (i32, i32) {
    %c0_i32 = arith.constant 0 : i32
    %c0_i32_0 = arith.constant 0 : i32
    return %arg0, %c0_i32 : i32, i32
  }
}

</mosaic_0001>

<llo_original>
// kernel: basic_block_forward_nchw.1
$region0: #{basic_block_forward_nchw.1}
  #allocation0 [shape = 'u32[]', space=smem, size = 0x4, offset = 0x4, fixed_abs, tag = 'smem constant byte address 0x4 - core index']
  #allocation1 [shape = 'u32[144,128]{1,0:T(1,128)}', space=vmem, size = 0x12000, scoped, tag = 'internal scratch']
  %s0 = inlined_call_operand.vmem [shape: bf16[32,128], index: 0, kind: input, shape index: {}]
  %s1 = inlined_call_operand.hbm [shape: bf16[3,128,256], index: 1, kind: input, shape index: {}]
  %s2 = inlined_call_operand.vmem [shape: f32[1,256], index: 2, kind: input, shape index: {}]
  %s3 = inlined_call_operand.vmem [shape: bf16[3,256,256], index: 3, kind: input, shape index: {}]
  %s4 = inlined_call_operand.hbm [shape: f32[1,256], index: 4, kind: input, shape index: {}]
  %s5 = inlined_call_operand.vmem [shape: bf16[32,32], index: 5, kind: input, shape index: {}]
  %s6 = inlined_call_operand.hbm [shape: bf16[32,32], index: 6, kind: input, shape index: {}]
  %s7 = inlined_call_operand.vmem [shape: bf16[128,256], index: 7, kind: input, shape index: {}]
  %s8 = inlined_call_operand.vmem [shape: bf16[32,256], index: 8, kind: output, shape index: {}]
  %s9 = sld [smem:[#allocation0]]
  $region54: #{basic_block_forward_nchw.1} parent=0
    _
  %s11 = ssub.s32 1, %s9
  %s12 = scalar_select 0, %s11, %s9
  $region1: #{basic_block_forward_nchw.1} parent=0
    #allocation2 [shape = 'u8[196608]{0}', space=vmem, size = 0x30000, scoped, tag = 'input window, operand 1, single buffered']
    #allocation3 [shape = 's32[1]{0}', space=sflag, size = 0x4, scoped, tag = 'scoped memory for basic_block_forward_nchw.1']
    #allocation4 [shape = 'u8[1024]{0}', space=vmem, size = 0x400, scoped, tag = 'input window, operand 4, single buffered']
    #allocation5 [shape = 's32[1]{0}', space=sflag, size = 0x4, scoped, tag = 'scoped memory for basic_block_forward_nchw.1']
    #allocation6 [shape = 'u8[8192]{0}', space=vmem, size = 0x2000, scoped, tag = 'input window, operand 6, single buffered']
    %13 = vsyncpa [#allocation3], 0
    %14 = vsyncpa [#allocation5], 0
    // Predicated region
    $region2: #{basic_block_forward_nchw.1} parent=1 // pred_check
      _
    $region3: #{basic_block_forward_nchw.1} parent=1 // pred_check_branch
      %16 = sbr.rel (0) target = $region5
    $region4: #{basic_block_forward_nchw.1} parent=1 // pred_region
      _
    $region5: #{basic_block_forward_nchw.1} parent=1 // pred_fallthru
      _
    // Predicated region
    $region6: #{basic_block_forward_nchw.1} parent=1 // pred_check
      _
    $region7: #{basic_block_forward_nchw.1} parent=1 // pred_check_branch
      %18 = sbr.rel (0) target = $region9
    $region8: #{basic_block_forward_nchw.1} parent=1 // pred_region
      %s20 = ssub.s32 6144, 6144
      %21 = vsyncadd [#allocation3], %s20
      %s22 = sshll.u32 [#allocation2], 4
      %s23 = int_to_ptr.vmem [resolvable:$true] %s22
      %28 = dma.hbm_to_vmem [thread:$0]  %s1, 6144, %s23, [#allocation3], 128, 128, 8
    $region9: #{basic_block_forward_nchw.1} parent=1 // pred_fallthru
      _
    // Predicated region
    $region10: #{basic_block_forward_nchw.1} parent=1 // pred_check
      _
    $region11: #{basic_block_forward_nchw.1} parent=1 // pred_check_branch
      %30 = sbr.rel (0) target = $region13
    $region12: #{basic_block_forward_nchw.1} parent=1 // pred_region
      _
    $region13: #{basic_block_forward_nchw.1} parent=1 // pred_fallthru
      _
    // Predicated region
    $region14: #{basic_block_forward_nchw.1} parent=1 // pred_check
      _
    $region15: #{basic_block_forward_nchw.1} parent=1 // pred_check_branch
      %32 = sbr.rel (0) target = $region17
    $region16: #{basic_block_forward_nchw.1} parent=1 // pred_region
      _
    $region17: #{basic_block_forward_nchw.1} parent=1 // pred_fallthru
      _
    // Predicated region
    $region18: #{basic_block_forward_nchw.1} parent=1 // pred_check
      _
    $region19: #{basic_block_forward_nchw.1} parent=1 // pred_check_branch
      %34 = sbr.rel (0) target = $region21
    $region20: #{basic_block_forward_nchw.1} parent=1 // pred_region
      %s36 = ssub.s32 32, 32
      %37 = vsyncadd [#allocation5], %s36
      %s39 = sshll.u32 [#allocation4], 4
      %s40 = int_to_ptr.vmem [resolvable:$true] %s39
      %42 = dma.hbm_to_vmem [thread:$0]  %s4, 32, %s40, [#allocation5]
    $region21: #{basic_block_forward_nchw.1} parent=1 // pred_fallthru
      _
    // Predicated region
    $region22: #{basic_block_forward_nchw.1} parent=1 // pred_check
      _
    $region23: #{basic_block_forward_nchw.1} parent=1 // pred_check_branch
      %44 = sbr.rel (0) target = $region25
    $region24: #{basic_block_forward_nchw.1} parent=1 // pred_region
      _
    $region25: #{basic_block_forward_nchw.1} parent=1 // pred_fallthru
      _
    // Predicated region
    $region26: #{basic_block_forward_nchw.1} parent=1 // pred_check
      _
    $region27: #{basic_block_forward_nchw.1} parent=1 // pred_check_branch
      %46 = sbr.rel (0) target = $region29
    $region28: #{basic_block_forward_nchw.1} parent=1 // pred_region
      %s48 = ssub.s32 256, 256
      %49 = vsyncadd [#allocation5], %s48
      %s50 = sshll.u32 [#allocation6], 4
      %s51 = int_to_ptr.vmem [resolvable:$true] %s50
      %56 = dma.hbm_to_vmem [thread:$0]  %s6, 256, %s51, [#allocation5], 64, 64, 4
    $region29: #{basic_block_forward_nchw.1} parent=1 // pred_fallthru
      _
    // Predicated region
    $region30: #{basic_block_forward_nchw.1} parent=1 // pred_check
      _
    $region31: #{basic_block_forward_nchw.1} parent=1 // pred_check_branch
      %58 = sbr.rel (0) target = $region33
    $region32: #{basic_block_forward_nchw.1} parent=1 // pred_region
      _
    $region33: #{basic_block_forward_nchw.1} parent=1 // pred_fallthru
      _
    // Predicated region
    $region34: #{basic_block_forward_nchw.1} parent=1 // pred_check
      _
    $region35: #{basic_block_forward_nchw.1} parent=1 // pred_check_branch
      %60 = sbr.rel (0) target = $region37
    $region36: #{basic_block_forward_nchw.1} parent=1 // pred_region
      %61 = dma.done [#allocation3], 6144
    $region37: #{basic_block_forward_nchw.1} parent=1 // pred_fallthru
      _
    // Predicated region
    $region38: #{basic_block_forward_nchw.1} parent=1 // pred_check
      _
    $region39: #{basic_block_forward_nchw.1} parent=1 // pred_check_branch
      %63 = sbr.rel (0) target = $region41
    $region40: #{basic_block_forward_nchw.1} parent=1 // pred_region
      %64 = dma.done [#allocation5], 32
    $region41: #{basic_block_forward_nchw.1} parent=1 // pred_fallthru
      _
    // Predicated region
    $region42: #{basic_block_forward_nchw.1} parent=1 // pred_check
      _
    $region43: #{basic_block_forward_nchw.1} parent=1 // pred_check_branch
      %66 = sbr.rel (0) target = $region45
    $region44: #{basic_block_forward_nchw.1} parent=1 // pred_region
      %67 = dma.done [#allocation5], 256
    $region45: #{basic_block_forward_nchw.1} parent=1 // pred_fallthru
      _
    %v69 = vld [vmem:[%s0] sm:$0xf]
    %v70 = vld [vmem:[%s0 + $0x4] sm:$0xf]
    %v71 = vld [vmem:[%s0 + $0x8] sm:$0xf]
    %v72 = vld [vmem:[%s0 + $0xc] sm:$0xf]
    %v73 = vld [vmem:[%s5] sm:$0xf]
    %v74 = vld [vmem:[%s5 + $0x4] sm:$0xf]
    %v75 = vld [vmem:[%s5 + $0x8] sm:$0xf]
    %v76 = vld [vmem:[%s5 + $0xc] sm:$0xf]
    %v81 = vunpack.c.l.b16 %v73
    %v82 = vunpack.c.l.b16 %v74
    %v83 = vunpack.c.l.b16 %v75
    %v84 = vunpack.c.l.b16 %v76
    %v85 = vpack.c.b16 %v82, %v81
    %v86 = vpack.c.b16 %v84, %v83
    %v91 = vunpack.c.l.b16 %v69
    %v92 = vunpack.c.l.b16 %v70
    %v93 = vunpack.c.l.b16 %v71
    %v94 = vunpack.c.l.b16 %v72
    %v95 = vpack.c.b16 %v92, %v91
    %v96 = vpack.c.b16 %v94, %v93
    %vm99 = vcmask 261120
    %v101 = vsel %vm99, %v85, 0
    %v104 = vsel %vm99, %v86, 0
    %106 = vmatprep.subr.bf16.mxu0 0
    %107 = vmatpush1.bf16.msra.mxu0 0
    %108 = vmatprep.subr.bf16.mxu0 0
    %109 = vmatpush1.bf16.msra.mxu0 0
    %110 = vmatprep.subr.bf16.mxu0 0
    %111 = vmatpush1.bf16.msra.mxu0 0
    %112 = vmatprep.subr.bf16.mxu0 0
    %113 = vmatpush1.bf16.msra.mxu0 0
    %114 = vmatprep.subr.bf16.mxu0 0
    %115 = vmatpush1.bf16.msra.mxu0 0
    %116 = vmatprep.subr.bf16.mxu0 0
    %117 = vmatpush1.bf16.msra.mxu0 0
    %118 = vmatprep.subr.bf16.mxu0 0
    %119 = vmatpush1.bf16.msra.mxu0 %v96
    %120 = vmatprep.subr.bf16.mxu0 0
    %121 = vmatpush1.bf16.msra.mxu0 %v95
    %122 = vmatprep.subr.bf16.mxu0 0
    %123 = vmatpush2.bf16.msra.mxu0 0
    %124 = vmatprep.subr.bf16.mxu0 0
    %125 = vmatpush2.bf16.msra.mxu0 0
    %126 = vmatprep.subr.bf16.mxu0 0
    %127 = vmatpush2.bf16.msra.mxu0 0
    %128 = vmatprep.subr.bf16.mxu0 0
    %129 = vmatpush2.bf16.msra.mxu0 0
    %130 = vmatprep.subr.bf16.mxu0 0
    %131 = vmatpush2.bf16.msra.mxu0 0
    %132 = vmatprep.subr.bf16.mxu0 0
    %133 = vmatpush2.bf16.msra.mxu0 0
    %134 = vmatprep.subr.bf16.mxu0 0
    %135 = vmatpush2.bf16.msra.mxu0 0
    %136 = vmatprep.subr.bf16.mxu0 0
    %137 = vmatpush2.bf16.msra.mxu0 0
    %138 = vmatprep.mubr.bf16.mxu0 0
    %139 = vmatmul.mubr.bf16.gmra.mxu0 %v101
    %v140 = vpop.f32.mrf.mxu0
    %v141 = vadd.f32 0.0, %v140
    %v142 = vpop.f32.mrf.mxu0
    %v143 = vpop.f32.mrf.mxu0
    %v144 = vadd.f32 0.0, %v143
    %v145 = vpop.f32.mrf.mxu0
    %146 = vmatprep.mubr.bf16.mxu0 0
    %147 = vmatmul.mubr.bf16.gmra.mxu0 %v104
    %v148 = vpop.f32.mrf.mxu0
    %v149 = vadd.f32 0.0, %v148
    %v150 = vpop.f32.mrf.mxu0
    %v151 = vpop.f32.mrf.mxu0
    %v152 = vadd.f32 0.0, %v151
    %v153 = vpop.f32.mrf.mxu0
    %154 = vdwg.mxu0
    %v155 = vpack.c.bf16 %v144, %v141
    %v156 = vpack.c.bf16 %v152, %v149
    %v157 = vld [vmem:[#allocation6] sm:$0xf]
    %v158 = vld [vmem:[#allocation6 + $0x4] sm:$0xf]
    %v159 = vld [vmem:[#allocation6 + $0x8] sm:$0xf]
    %v160 = vld [vmem:[#allocation6 + $0xc] sm:$0xf]
    %v165 = vunpack.c.l.b16 %v157
    %v166 = vunpack.c.l.b16 %v158
    %v167 = vunpack.c.l.b16 %v159
    %v168 = vunpack.c.l.b16 %v160
    %v169 = vpack.c.b16 %v166, %v165
    %v170 = vpack.c.b16 %v168, %v167
    %v172 = vsel %vm99, %v169, 0
    %v175 = vsel %vm99, %v170, 0
    %177 = vmatprep.subr.bf16.mxu0 0
    %178 = vmatpush1.bf16.msra.mxu0 0
    %179 = vmatprep.subr.bf16.mxu0 0
    %180 = vmatpush1.bf16.msra.mxu0 0
    %181 = vmatprep.subr.bf16.mxu0 0
    %182 = vmatpush1.bf16.msra.mxu0 0
    %183 = vmatprep.subr.bf16.mxu0 0
    %184 = vmatpush1.bf16.msra.mxu0 0
    %185 = vmatprep.subr.bf16.mxu0 0
    %186 = vmatpush1.bf16.msra.mxu0 0
    %187 = vmatprep.subr.bf16.mxu0 0
    %188 = vmatpush1.bf16.msra.mxu0 0
    %189 = vmatprep.subr.bf16.mxu0 0
    %190 = vmatpush1.bf16.msra.mxu0 %v96
    %191 = vmatprep.subr.bf16.mxu0 0
    %192 = vmatpush1.bf16.msra.mxu0 %v95
    %193 = vmatprep.subr.bf16.mxu0 0
    %194 = vmatpush2.bf16.msra.mxu0 0
    %195 = vmatprep.subr.bf16.mxu0 0
    %196 = vmatpush2.bf16.msra.mxu0 0
    %197 = vmatprep.subr.bf16.mxu0 0
    %198 = vmatpush2.bf16.msra.mxu0 0
    %199 = vmatprep.subr.bf16.mxu0 0
    %200 = vmatpush2.bf16.msra.mxu0 0
    %201 = vmatprep.subr.bf16.mxu0 0
    %202 = vmatpush2.bf16.msra.mxu0 0
    %203 = vmatprep.subr.bf16.mxu0 0
    %204 = vmatpush2.bf16.msra.mxu0 0
    %205 = vmatprep.subr.bf16.mxu0 0
    %206 = vmatpush2.bf16.msra.mxu0 0
    %207 = vmatprep.subr.bf16.mxu0 0
    %208 = vmatpush2.bf16.msra.mxu0 0
    %209 = vmatprep.mubr.bf16.mxu0 0
    %210 = vmatmul.mubr.bf16.gmra.mxu0 %v172
    %v211 = vpop.f32.mrf.mxu0
    %v212 = vadd.f32 0.0, %v211
    %v213 = vpop.f32.mrf.mxu0
    %v214 = vpop.f32.mrf.mxu0
    %v215 = vadd.f32 0.0, %v214
    %v216 = vpop.f32.mrf.mxu0
    %217 = vmatprep.mubr.bf16.mxu0 0
    %218 = vmatmul.mubr.bf16.gmra.mxu0 %v175
    %v219 = vpop.f32.mrf.mxu0
    %v220 = vadd.f32 0.0, %v219
    %v221 = vpop.f32.mrf.mxu0
    %v222 = vpop.f32.mrf.mxu0
    %v223 = vadd.f32 0.0, %v222
    %v224 = vpop.f32.mrf.mxu0
    %225 = vdwg.mxu0
    %v226 = vpack.c.bf16 %v215, %v212
    %v227 = vpack.c.bf16 %v223, %v220
    %s228 = scalar_lea.vmem [#allocation2], 128
    %v229 = vld [vmem:[%s228] sm:$0xff]
    %v230 = vld [vmem:[%s228 + $0x8] sm:$0xff]
    %v231 = vld [vmem:[%s228 + $0x10] sm:$0xff]
    %v232 = vld [vmem:[%s228 + $0x18] sm:$0xff]
    %v233 = vld [vmem:[%s228 + $0x20] sm:$0xff]
    %v234 = vld [vmem:[%s228 + $0x28] sm:$0xff]
    %v235 = vld [vmem:[%s228 + $0x30] sm:$0xff]
    %v236 = vld [vmem:[%s228 + $0x38] sm:$0xff]
    %v237 = vld [vmem:[%s228 + $0x40] sm:$0xff]
    %v238 = vld [vmem:[%s228 + $0x48] sm:$0xff]
    %v239 = vld [vmem:[%s228 + $0x50] sm:$0xff]
    %v240 = vld [vmem:[%s228 + $0x58] sm:$0xff]
    %v241 = vld [vmem:[%s228 + $0x60] sm:$0xff]
    %v242 = vld [vmem:[%s228 + $0x68] sm:$0xff]
    %v243 = vld [vmem:[%s228 + $0x70] sm:$0xff]
    %v244 = vld [vmem:[%s228 + $0x78] sm:$0xff]
    %v245 = vld [vmem:[#allocation2] sm:$0xff]
    %v246 = vld [vmem:[#allocation2 + $0x8] sm:$0xff]
    %v247 = vld [vmem:[#allocation2 + $0x10] sm:$0xff]
    %v248 = vld [vmem:[#allocation2 + $0x18] sm:$0xff]
    %v249 = vld [vmem:[#allocation2 + $0x20] sm:$0xff]
    %v250 = vld [vmem:[#allocation2 + $0x28] sm:$0xff]
    %v251 = vld [vmem:[#allocation2 + $0x30] sm:$0xff]
    %v252 = vld [vmem:[#allocation2 + $0x38] sm:$0xff]
    %v253 = vld [vmem:[#allocation2 + $0x40] sm:$0xff]
    %v254 = vld [vmem:[#allocation2 + $0x48] sm:$0xff]
    %v255 = vld [vmem:[#allocation2 + $0x50] sm:$0xff]
    %v256 = vld [vmem:[#allocation2 + $0x58] sm:$0xff]
    %v257 = vld [vmem:[#allocation2 + $0x60] sm:$0xff]
    %v258 = vld [vmem:[#allocation2 + $0x68] sm:$0xff]
    %v259 = vld [vmem:[#allocation2 + $0x70] sm:$0xff]
    %v260 = vld [vmem:[#allocation2 + $0x78] sm:$0xff]
    %v277 = vunpack.c.l.b16 %v245
    %v278 = vunpack.c.h.b16 %v245
    %v279 = vunpack.c.l.b16 %v246
    %v280 = vunpack.c.h.b16 %v246
    %v281 = vunpack.c.l.b16 %v247
    %v282 = vunpack.c.h.b16 %v247
    %v283 = vunpack.c.l.b16 %v248
    %v284 = vunpack.c.h.b16 %v248
    %v285 = vunpack.c.l.b16 %v249
    %v286 = vunpack.c.h.b16 %v249
    %v287 = vunpack.c.l.b16 %v250
    %v288 = vunpack.c.h.b16 %v250
    %v289 = vunpack.c.l.b16 %v251
    %v290 = vunpack.c.h.b16 %v251
    %v291 = vunpack.c.l.b16 %v252
    %v292 = vunpack.c.h.b16 %v252
    %v293 = vunpack.c.l.b16 %v253
    %v294 = vunpack.c.h.b16 %v253
    %v295 = vunpack.c.l.b16 %v254
    %v296 = vunpack.c.h.b16 %v254
    %v297 = vunpack.c.l.b16 %v255
    %v298 = vunpack.c.h.b16 %v255
    %v299 = vunpack.c.l.b16 %v256
    %v300 = vunpack.c.h.b16 %v256
    %v301 = vunpack.c.l.b16 %v257
    %v302 = vunpack.c.h.b16 %v257
    %v303 = vunpack.c.l.b16 %v258
    %v304 = vunpack.c.h.b16 %v258
    %v305 = vunpack.c.l.b16 %v259
    %v306 = vunpack.c.h.b16 %v259
    %v307 = vunpack.c.l.b16 %v260
    %v308 = vunpack.c.h.b16 %v260
    %v309 = vpack.c.b16 %v279, %v277
    %v310 = vpack.c.b16 %v280, %v278
    %v311 = vpack.c.b16 %v283, %v281
    %v312 = vpack.c.b16 %v284, %v282
    %v313 = vpack.c.b16 %v287, %v285
    %v314 = vpack.c.b16 %v288, %v286
    %v315 = vpack.c.b16 %v291, %v289
    %v316 = vpack.c.b16 %v292, %v290
    %v317 = vpack.c.b16 %v295, %v293
    %v318 = vpack.c.b16 %v296, %v294
    %v319 = vpack.c.b16 %v299, %v297
    %v320 = vpack.c.b16 %v300, %v298
    %v321 = vpack.c.b16 %v303, %v301
    %v322 = vpack.c.b16 %v304, %v302
    %v323 = vpack.c.b16 %v307, %v305
    %v324 = vpack.c.b16 %v308, %v306
    %341 = vmatprep.subr.bf16.mxu0 %v324
    %342 = vmatpush1.bf16.msra.mxu0 %v323
    %343 = vmatprep.subr.bf16.mxu0 %v322
    %344 = vmatpush1.bf16.msra.mxu0 %v321
    %345 = vmatprep.subr.bf16.mxu0 %v320
    %346 = vmatpush1.bf16.msra.mxu0 %v319
    %347 = vmatprep.subr.bf16.mxu0 %v318
    %348 = vmatpush1.bf16.msra.mxu0 %v317
    %349 = vmatprep.subr.bf16.mxu0 %v316
    %350 = vmatpush1.bf16.msra.mxu0 %v315
    %351 = vmatprep.subr.bf16.mxu0 %v314
    %352 = vmatpush1.bf16.msra.mxu0 %v313
    %353 = vmatprep.subr.bf16.mxu0 %v312
    %354 = vmatpush1.bf16.msra.mxu0 %v311
    %355 = vmatprep.subr.bf16.mxu0 %v310
    %356 = vmatpush1.bf16.msra.mxu0 %v309
    %357 = vmatprep.subr.bf16.mxu0 0
    %358 = vmatpush2.bf16.msra.mxu0 0
    %359 = vmatprep.subr.bf16.mxu0 0
    %360 = vmatpush2.bf16.msra.mxu0 0
    %361 = vmatprep.subr.bf16.mxu0 0
    %362 = vmatpush2.bf16.msra.mxu0 0
    %363 = vmatprep.subr.bf16.mxu0 0
    %364 = vmatpush2.bf16.msra.mxu0 0
    %365 = vmatprep.subr.bf16.mxu0 0
    %366 = vmatpush2.bf16.msra.mxu0 0
    %367 = vmatprep.subr.bf16.mxu0 0
    %368 = vmatpush2.bf16.msra.mxu0 0
    %369 = vmatprep.subr.bf16.mxu0 0
    %370 = vmatpush2.bf16.msra.mxu0 0
    %371 = vmatprep.subr.bf16.mxu0 0
    %372 = vmatpush2.bf16.msra.mxu0 0
    %373 = vmatprep.mubr.bf16.mxu0 0
    %374 = vmatmul.mubr.bf16.gmra.mxu0 %v155
    %v375 = vpop.f32.mrf.mxu0
    %v376 = vadd.f32 0.0, %v375
    %v377 = vpop.f32.mrf.mxu0
    %v378 = vadd.f32 0.0, %v377
    %v379 = vpop.f32.mrf.mxu0
    %v380 = vadd.f32 0.0, %v379
    %v381 = vpop.f32.mrf.mxu0
    %v382 = vadd.f32 0.0, %v381
    %383 = vmatprep.mubr.bf16.mxu0 0
    %384 = vmatmul.mubr.bf16.gmra.mxu0 %v156
    %v385 = vpop.f32.mrf.mxu0
    %v386 = vadd.f32 0.0, %v385
    %v387 = vpop.f32.mrf.mxu0
    %v388 = vadd.f32 0.0, %v387
    %v389 = vpop.f32.mrf.mxu0
    %v390 = vadd.f32 0.0, %v389
    %v391 = vpop.f32.mrf.mxu0
    %v392 = vadd.f32 0.0, %v391
    %393 = vdwg.mxu0
    %v410 = vunpack.c.l.b16 %v229
    %v411 = vunpack.c.h.b16 %v229
    %v412 = vunpack.c.l.b16 %v230
    %v413 = vunpack.c.h.b16 %v230
    %v414 = vunpack.c.l.b16 %v231
    %v415 = vunpack.c.h.b16 %v231
    %v416 = vunpack.c.l.b16 %v232
    %v417 = vunpack.c.h.b16 %v232
    %v418 = vunpack.c.l.b16 %v233
    %v419 = vunpack.c.h.b16 %v233
    %v420 = vunpack.c.l.b16 %v234
    %v421 = vunpack.c.h.b16 %v234
    %v422 = vunpack.c.l.b16 %v235
    %v423 = vunpack.c.h.b16 %v235
    %v424 = vunpack.c.l.b16 %v236
    %v425 = vunpack.c.h.b16 %v236
    %v426 = vunpack.c.l.b16 %v237
    %v427 = vunpack.c.h.b16 %v237
    %v428 = vunpack.c.l.b16 %v238
    %v429 = vunpack.c.h.b16 %v238
    %v430 = vunpack.c.l.b16 %v239
    %v431 = vunpack.c.h.b16 %v239
    %v432 = vunpack.c.l.b16 %v240
    %v433 = vunpack.c.h.b16 %v240
    %v434 = vunpack.c.l.b16 %v241
    %v435 = vunpack.c.h.b16 %v241
    %v436 = vunpack.c.l.b16 %v242
    %v437 = vunpack.c.h.b16 %v242
    %v438 = vunpack.c.l.b16 %v243
    %v439 = vunpack.c.h.b16 %v243
    %v440 = vunpack.c.l.b16 %v244
    %v441 = vunpack.c.h.b16 %v244
    %v442 = vpack.c.b16 %v412, %v410
    %v443 = vpack.c.b16 %v413, %v411
    %v444 = vpack.c.b16 %v416, %v414
    %v445 = vpack.c.b16 %v417, %v415
    %v446 = vpack.c.b16 %v420, %v418
    %v447 = vpack.c.b16 %v421, %v419
    %v448 = vpack.c.b16 %v424, %v422
    %v449 = vpack.c.b16 %v425, %v423
    %v450 = vpack.c.b16 %v428, %v426
    %v451 = vpack.c.b16 %v429, %v427
    %v452 = vpack.c.b16 %v432, %v430
    %v453 = vpack.c.b16 %v433, %v431
    %v454 = vpack.c.b16 %v436, %v434
    %v455 = vpack.c.b16 %v437, %v435
    %v456 = vpack.c.b16 %v440, %v438
    %v457 = vpack.c.b16 %v441, %v439
    %474 = vmatprep.subr.bf16.mxu0 %v457
    %475 = vmatpush1.bf16.msra.mxu0 %v456
    %476 = vmatprep.subr.bf16.mxu0 %v455
    %477 = vmatpush1.bf16.msra.mxu0 %v454
    %478 = vmatprep.subr.bf16.mxu0 %v453
    %479 = vmatpush1.bf16.msra.mxu0 %v452
    %480 = vmatprep.subr.bf16.mxu0 %v451
    %481 = vmatpush1.bf16.msra.mxu0 %v450
    %482 = vmatprep.subr.bf16.mxu0 %v449
    %483 = vmatpush1.bf16.msra.mxu0 %v448
    %484 = vmatprep.subr.bf16.mxu0 %v447
    %485 = vmatpush1.bf16.msra.mxu0 %v446
    %486 = vmatprep.subr.bf16.mxu0 %v445
    %487 = vmatpush1.bf16.msra.mxu0 %v444
    %488 = vmatprep.subr.bf16.mxu0 %v443
    %489 = vmatpush1.bf16.msra.mxu0 %v442
    %490 = vmatprep.subr.bf16.mxu0 0
    %491 = vmatpush2.bf16.msra.mxu0 0
    %492 = vmatprep.subr.bf16.mxu0 0
    %493 = vmatpush2.bf16.msra.mxu0 0
    %494 = vmatprep.subr.bf16.mxu0 0
    %495 = vmatpush2.bf16.msra.mxu0 0
    %496 = vmatprep.subr.bf16.mxu0 0
    %497 = vmatpush2.bf16.msra.mxu0 0
    %498 = vmatprep.subr.bf16.mxu0 0
    %499 = vmatpush2.bf16.msra.mxu0 0
    %500 = vmatprep.subr.bf16.mxu0 0
    %501 = vmatpush2.bf16.msra.mxu0 0
    %502 = vmatprep.subr.bf16.mxu0 0
    %503 = vmatpush2.bf16.msra.mxu0 0
    %504 = vmatprep.subr.bf16.mxu0 0
    %505 = vmatpush2.bf16.msra.mxu0 0
    %506 = vmatprep.mubr.bf16.mxu0 0
    %507 = vmatmul.mubr.bf16.gmra.mxu0 %v95
    %v508 = vpop.f32.mrf.mxu0
    %v509 = vadd.f32 %v376, %v508
    %v510 = vpop.f32.mrf.mxu0
    %v511 = vadd.f32 %v378, %v510
    %v512 = vpop.f32.mrf.mxu0
    %v513 = vadd.f32 %v380, %v512
    %v514 = vpop.f32.mrf.mxu0
    %v515 = vadd.f32 %v382, %v514
    %516 = vmatprep.mubr.bf16.mxu0 0
    %517 = vmatmul.mubr.bf16.gmra.mxu0 %v96
    %v518 = vpop.f32.mrf.mxu0
    %v519 = vadd.f32 %v386, %v518
    %v520 = vpop.f32.mrf.mxu0
    %v521 = vadd.f32 %v388, %v520
    %v522 = vpop.f32.mrf.mxu0
    %v523 = vadd.f32 %v390, %v522
    %v524 = vpop.f32.mrf.mxu0
    %v525 = vadd.f32 %v392, %v524
    %526 = vdwg.mxu0
    %s527 = scalar_lea.vmem [#allocation2], 256
    %v528 = vld [vmem:[%s527] sm:$0xff]
    %v529 = vld [vmem:[%s527 + $0x8] sm:$0xff]
    %v530 = vld [vmem:[%s527 + $0x10] sm:$0xff]
    %v531 = vld [vmem:[%s527 + $0x18] sm:$0xff]
    %v532 = vld [vmem:[%s527 + $0x20] sm:$0xff]
    %v533 = vld [vmem:[%s527 + $0x28] sm:$0xff]
    %v534 = vld [vmem:[%s527 + $0x30] sm:$0xff]
    %v535 = vld [vmem:[%s527 + $0x38] sm:$0xff]
    %v536 = vld [vmem:[%s527 + $0x40] sm:$0xff]
    %v537 = vld [vmem:[%s527 + $0x48] sm:$0xff]
    %v538 = vld [vmem:[%s527 + $0x50] sm:$0xff]
    %v539 = vld [vmem:[%s527 + $0x58] sm:$0xff]
    %v540 = vld [vmem:[%s527 + $0x60] sm:$0xff]
    %v541 = vld [vmem:[%s527 + $0x68] sm:$0xff]
    %v542 = vld [vmem:[%s527 + $0x70] sm:$0xff]
    %v543 = vld [vmem:[%s527 + $0x78] sm:$0xff]
    %v560 = vunpack.c.l.b16 %v528
    %v561 = vunpack.c.h.b16 %v528
    %v562 = vunpack.c.l.b16 %v529
    %v563 = vunpack.c.h.b16 %v529
    %v564 = vunpack.c.l.b16 %v530
    %v565 = vunpack.c.h.b16 %v530
    %v566 = vunpack.c.l.b16 %v531
    %v567 = vunpack.c.h.b16 %v531
    %v568 = vunpack.c.l.b16 %v532
    %v569 = vunpack.c.h.b16 %v532
    %v570 = vunpack.c.l.b16 %v533
    %v571 = vunpack.c.h.b16 %v533
    %v572 = vunpack.c.l.b16 %v534
    %v573 = vunpack.c.h.b16 %v534
    %v574 = vunpack.c.l.b16 %v535
    %v575 = vunpack.c.h.b16 %v535
    %v576 = vunpack.c.l.b16 %v536
    %v577 = vunpack.c.h.b16 %v536
    %v578 = vunpack.c.l.b16 %v537
    %v579 = vunpack.c.h.b16 %v537
    %v580 = vunpack.c.l.b16 %v538
    %v581 = vunpack.c.h.b16 %v538
    %v582 = vunpack.c.l.b16 %v539
    %v583 = vunpack.c.h.b16 %v539
    %v584 = vunpack.c.l.b16 %v540
    %v585 = vunpack.c.h.b16 %v540
    %v586 = vunpack.c.l.b16 %v541
    %v587 = vunpack.c.h.b16 %v541
    %v588 = vunpack.c.l.b16 %v542
    %v589 = vunpack.c.h.b16 %v542
    %v590 = vunpack.c.l.b16 %v543
    %v591 = vunpack.c.h.b16 %v543
    %v592 = vpack.c.b16 %v562, %v560
    %v593 = vpack.c.b16 %v563, %v561
    %v594 = vpack.c.b16 %v566, %v564
    %v595 = vpack.c.b16 %v567, %v565
    %v596 = vpack.c.b16 %v570, %v568
    %v597 = vpack.c.b16 %v571, %v569
    %v598 = vpack.c.b16 %v574, %v572
    %v599 = vpack.c.b16 %v575, %v573
    %v600 = vpack.c.b16 %v578, %v576
    %v601 = vpack.c.b16 %v579, %v577
    %v602 = vpack.c.b16 %v582, %v580
    %v603 = vpack.c.b16 %v583, %v581
    %v604 = vpack.c.b16 %v586, %v584
    %v605 = vpack.c.b16 %v587, %v585
    %v606 = vpack.c.b16 %v590, %v588
    %v607 = vpack.c.b16 %v591, %v589
    %624 = vmatprep.subr.bf16.mxu0 %v607
    %625 = vmatpush1.bf16.msra.mxu0 %v606
    %626 = vmatprep.subr.bf16.mxu0 %v605
    %627 = vmatpush1.bf16.msra.mxu0 %v604
    %628 = vmatprep.subr.bf16.mxu0 %v603
    %629 = vmatpush1.bf16.msra.mxu0 %v602
    %630 = vmatprep.subr.bf16.mxu0 %v601
    %631 = vmatpush1.bf16.msra.mxu0 %v600
    %632 = vmatprep.subr.bf16.mxu0 %v599
    %633 = vmatpush1.bf16.msra.mxu0 %v598
    %634 = vmatprep.subr.bf16.mxu0 %v597
    %635 = vmatpush1.bf16.msra.mxu0 %v596
    %636 = vmatprep.subr.bf16.mxu0 %v595
    %637 = vmatpush1.bf16.msra.mxu0 %v594
    %638 = vmatprep.subr.bf16.mxu0 %v593
    %639 = vmatpush1.bf16.msra.mxu0 %v592
    %640 = vmatprep.subr.bf16.mxu0 0
    %641 = vmatpush2.bf16.msra.mxu0 0
    %642 = vmatprep.subr.bf16.mxu0 0
    %643 = vmatpush2.bf16.msra.mxu0 0
    %644 = vmatprep.subr.bf16.mxu0 0
    %645 = vmatpush2.bf16.msra.mxu0 0
    %646 = vmatprep.subr.bf16.mxu0 0
    %647 = vmatpush2.bf16.msra.mxu0 0
    %648 = vmatprep.subr.bf16.mxu0 0
    %649 = vmatpush2.bf16.msra.mxu0 0
    %650 = vmatprep.subr.bf16.mxu0 0
    %651 = vmatpush2.bf16.msra.mxu0 0
    %652 = vmatprep.subr.bf16.mxu0 0
    %653 = vmatpush2.bf16.msra.mxu0 0
    %654 = vmatprep.subr.bf16.mxu0 0
    %655 = vmatpush2.bf16.msra.mxu0 0
    %656 = vmatprep.mubr.bf16.mxu0 0
    %657 = vmatmul.mubr.bf16.gmra.mxu0 %v226
    %v658 = vpop.f32.mrf.mxu0
    %v659 = vadd.f32 0.0, %v658
    %v660 = vpop.f32.mrf.mxu0
    %v661 = vadd.f32 0.0, %v660
    %v662 = vpop.f32.mrf.mxu0
    %v663 = vadd.f32 0.0, %v662
    %v664 = vpop.f32.mrf.mxu0
    %v665 = vadd.f32 0.0, %v664
    %666 = vmatprep.mubr.bf16.mxu0 0
    %667 = vmatmul.mubr.bf16.gmra.mxu0 %v227
    %v668 = vpop.f32.mrf.mxu0
    %v669 = vadd.f32 0.0, %v668
    %v670 = vpop.f32.mrf.mxu0
    %v671 = vadd.f32 0.0, %v670
    %v672 = vpop.f32.mrf.mxu0
    %v673 = vadd.f32 0.0, %v672
    %v674 = vpop.f32.mrf.mxu0
    %v675 = vadd.f32 0.0, %v674
    %676 = vdwg.mxu0
    %v677 = vadd.f32 %v509, %v659
    %v678 = vadd.f32 %v511, %v661
    %v679 = vadd.f32 %v513, %v663
    %v680 = vadd.f32 %v515, %v665
    %v681 = vadd.f32 %v519, %v669
    %v682 = vadd.f32 %v521, %v671
    %v683 = vadd.f32 %v523, %v673
    %v684 = vadd.f32 %v525, %v675
    %v685 = vld [vmem:[%s2] sm:$0x3]
    %v687 = vlaneseq
    %v688 = vshrl.u32 %v687, 7
    %v689 = vsub.s32 0, %v688
    %v690 = vrot.slane %v685, %v689
    %v691 = vlaneseq
    %v692 = vshrl.u32 %v691, 7
    %v693 = vsub.s32 1, %v692
    %v694 = vrot.slane %v685, %v693
    %v697 = vadd.f32 %v677, %v690
    %v698 = vadd.f32 %v678, %v694
    %v699 = vadd.f32 %v679, %v690
    %v700 = vadd.f32 %v680, %v694
    %v701 = vadd.f32 %v681, %v690
    %v702 = vadd.f32 %v682, %v694
    %v703 = vadd.f32 %v683, %v690
    %v704 = vadd.f32 %v684, %v694
    %v705 = vmax.f32 %v697, 0.0
    %v706 = vmax.f32 %v698, 0.0
    %v707 = vmax.f32 %v699, 0.0
    %v708 = vmax.f32 %v700, 0.0
    %v709 = vmax.f32 %v701, 0.0
    %v710 = vmax.f32 %v702, 0.0
    %v711 = vmax.f32 %v703, 0.0
    %v712 = vmax.f32 %v704, 0.0
    %v713 = vpack.c.bf16 %v707, %v705
    %v714 = vpack.c.bf16 %v708, %v706
    %v715 = vpack.c.bf16 %v711, %v709
    %v716 = vpack.c.bf16 %v712, %v710
    %v717 = vld [vmem:[%s7] sm:$0xff]
    %v718 = vld [vmem:[%s7 + $0x8] sm:$0xff]
    %v719 = vld [vmem:[%s7 + $0x10] sm:$0xff]
    %v720 = vld [vmem:[%s7 + $0x18] sm:$0xff]
    %v721 = vld [vmem:[%s7 + $0x20] sm:$0xff]
    %v722 = vld [vmem:[%s7 + $0x28] sm:$0xff]
    %v723 = vld [vmem:[%s7 + $0x30] sm:$0xff]
    %v724 = vld [vmem:[%s7 + $0x38] sm:$0xff]
    %v725 = vld [vmem:[%s7 + $0x40] sm:$0xff]
    %v726 = vld [vmem:[%s7 + $0x48] sm:$0xff]
    %v727 = vld [vmem:[%s7 + $0x50] sm:$0xff]
    %v728 = vld [vmem:[%s7 + $0x58] sm:$0xff]
    %v729 = vld [vmem:[%s7 + $0x60] sm:$0xff]
    %v730 = vld [vmem:[%s7 + $0x68] sm:$0xff]
    %v731 = vld [vmem:[%s7 + $0x70] sm:$0xff]
    %v732 = vld [vmem:[%s7 + $0x78] sm:$0xff]
    %v749 = vunpack.c.l.b16 %v717
    %v750 = vunpack.c.h.b16 %v717
    %v751 = vunpack.c.l.b16 %v718
    %v752 = vunpack.c.h.b16 %v718
    %v753 = vunpack.c.l.b16 %v719
    %v754 = vunpack.c.h.b16 %v719
    %v755 = vunpack.c.l.b16 %v720
    %v756 = vunpack.c.h.b16 %v720
    %v757 = vunpack.c.l.b16 %v721
    %v758 = vunpack.c.h.b16 %v721
    %v759 = vunpack.c.l.b16 %v722
    %v760 = vunpack.c.h.b16 %v722
    %v761 = vunpack.c.l.b16 %v723
    %v762 = vunpack.c.h.b16 %v723
    %v763 = vunpack.c.l.b16 %v724
    %v764 = vunpack.c.h.b16 %v724
    %v765 = vunpack.c.l.b16 %v725
    %v766 = vunpack.c.h.b16 %v725
    %v767 = vunpack.c.l.b16 %v726
    %v768 = vunpack.c.h.b16 %v726
    %v769 = vunpack.c.l.b16 %v727
    %v770 = vunpack.c.h.b16 %v727
    %v771 = vunpack.c.l.b16 %v728
    %v772 = vunpack.c.h.b16 %v728
    %v773 = vunpack.c.l.b16 %v729
    %v774 = vunpack.c.h.b16 %v729
    %v775 = vunpack.c.l.b16 %v730
    %v776 = vunpack.c.h.b16 %v730
    %v777 = vunpack.c.l.b16 %v731
    %v778 = vunpack.c.h.b16 %v731
    %v779 = vunpack.c.l.b16 %v732
    %v780 = vunpack.c.h.b16 %v732
    %v781 = vpack.c.b16 %v751, %v749
    %v782 = vpack.c.b16 %v752, %v750
    %v783 = vpack.c.b16 %v755, %v753
    %v784 = vpack.c.b16 %v756, %v754
    %v785 = vpack.c.b16 %v759, %v757
    %v786 = vpack.c.b16 %v760, %v758
    %v787 = vpack.c.b16 %v763, %v761
    %v788 = vpack.c.b16 %v764, %v762
    %v789 = vpack.c.b16 %v767, %v765
    %v790 = vpack.c.b16 %v768, %v766
    %v791 = vpack.c.b16 %v771, %v769
    %v792 = vpack.c.b16 %v772, %v770
    %v793 = vpack.c.b16 %v775, %v773
    %v794 = vpack.c.b16 %v776, %v774
    %v795 = vpack.c.b16 %v779, %v777
    %v796 = vpack.c.b16 %v780, %v778
    %813 = vmatprep.subr.bf16.mxu0 %v796
    %814 = vmatpush1.bf16.msra.mxu0 %v795
    %815 = vmatprep.subr.bf16.mxu0 %v794
    %816 = vmatpush1.bf16.msra.mxu0 %v793
    %817 = vmatprep.subr.bf16.mxu0 %v792
    %818 = vmatpush1.bf16.msra.mxu0 %v791
    %819 = vmatprep.subr.bf16.mxu0 %v790
    %820 = vmatpush1.bf16.msra.mxu0 %v789
    %821 = vmatprep.subr.bf16.mxu0 %v788
    %822 = vmatpush1.bf16.msra.mxu0 %v787
    %823 = vmatprep.subr.bf16.mxu0 %v786
    %824 = vmatpush1.bf16.msra.mxu0 %v785
    %825 = vmatprep.subr.bf16.mxu0 %v784
    %826 = vmatpush1.bf16.msra.mxu0 %v783
    %827 = vmatprep.subr.bf16.mxu0 %v782
    %828 = vmatpush1.bf16.msra.mxu0 %v781
    %829 = vmatprep.subr.bf16.mxu0 0
    %830 = vmatpush2.bf16.msra.mxu0 0
    %831 = vmatprep.subr.bf16.mxu0 0
    %832 = vmatpush2.bf16.msra.mxu0 0
    %833 = vmatprep.subr.bf16.mxu0 0
    %834 = vmatpush2.bf16.msra.mxu0 0
    %835 = vmatprep.subr.bf16.mxu0 0
    %836 = vmatpush2.bf16.msra.mxu0 0
    %837 = vmatprep.subr.bf16.mxu0 0
    %838 = vmatpush2.bf16.msra.mxu0 0
    %839 = vmatprep.subr.bf16.mxu0 0
    %840 = vmatpush2.bf16.msra.mxu0 0
    %841 = vmatprep.subr.bf16.mxu0 0
    %842 = vmatpush2.bf16.msra.mxu0 0
    %843 = vmatprep.subr.bf16.mxu0 0
    %844 = vmatpush2.bf16.msra.mxu0 0
    %845 = vmatprep.mubr.bf16.mxu0 0
    %846 = vmatmul.mubr.bf16.gmra.mxu0 %v95
    %v847 = vpop.f32.mrf.mxu0
    %v848 = vadd.f32 0.0, %v847
    %v849 = vpop.f32.mrf.mxu0
    %v850 = vadd.f32 0.0, %v849
    %v851 = vpop.f32.mrf.mxu0
    %v852 = vadd.f32 0.0, %v851
    %v853 = vpop.f32.mrf.mxu0
    %v854 = vadd.f32 0.0, %v853
    %855 = vmatprep.mubr.bf16.mxu0 0
    %856 = vmatmul.mubr.bf16.gmra.mxu0 %v96
    %v857 = vpop.f32.mrf.mxu0
    %v858 = vadd.f32 0.0, %v857
    %v859 = vpop.f32.mrf.mxu0
    %v860 = vadd.f32 0.0, %v859
    %v861 = vpop.f32.mrf.mxu0
    %v862 = vadd.f32 0.0, %v861
    %v863 = vpop.f32.mrf.mxu0
    %v864 = vadd.f32 0.0, %v863
    %865 = vdwg.mxu0
    %866 = vmatprep.subr.bf16.mxu0 0
    %867 = vmatpush1.bf16.msra.mxu0 0
    %868 = vmatprep.subr.bf16.mxu0 0
    %869 = vmatpush1.bf16.msra.mxu0 0
    %870 = vmatprep.subr.bf16.mxu0 0
    %871 = vmatpush1.bf16.msra.mxu0 0
    %872 = vmatprep.subr.bf16.mxu0 0
    %873 = vmatpush1.bf16.msra.mxu0 0
    %874 = vmatprep.subr.bf16.mxu0 0
    %875 = vmatpush1.bf16.msra.mxu0 0
    %876 = vmatprep.subr.bf16.mxu0 0
    %877 = vmatpush1.bf16.msra.mxu0 0
    %878 = vmatprep.subr.bf16.mxu0 %v716
    %879 = vmatpush1.bf16.msra.mxu0 %v715
    %880 = vmatprep.subr.bf16.mxu0 %v714
    %881 = vmatpush1.bf16.msra.mxu0 %v713
    %882 = vmatprep.subr.bf16.mxu0 0
    %883 = vmatpush2.bf16.msra.mxu0 0
    %884 = vmatprep.subr.bf16.mxu0 0
    %885 = vmatpush2.bf16.msra.mxu0 0
    %886 = vmatprep.subr.bf16.mxu0 0
    %887 = vmatpush2.bf16.msra.mxu0 0
    %888 = vmatprep.subr.bf16.mxu0 0
    %889 = vmatpush2.bf16.msra.mxu0 0
    %890 = vmatprep.subr.bf16.mxu0 0
    %891 = vmatpush2.bf16.msra.mxu0 0
    %892 = vmatprep.subr.bf16.mxu0 0
    %893 = vmatpush2.bf16.msra.mxu0 0
    %894 = vmatprep.subr.bf16.mxu0 0
    %895 = vmatpush2.bf16.msra.mxu0 0
    %896 = vmatprep.subr.bf16.mxu0 0
    %897 = vmatpush2.bf16.msra.mxu0 0
    %898 = vmatprep.mubr.bf16.mxu0 0
    %899 = vmatmul.mubr.bf16.gmra.mxu0 %v101
    %v900 = vpop.f32.mrf.mxu0
    %v901 = vadd.f32 0.0, %v900
    %v902 = vpop.f32.mrf.mxu0
    %v903 = vadd.f32 0.0, %v902
    %v904 = vpop.f32.mrf.mxu0
    %v905 = vadd.f32 0.0, %v904
    %v906 = vpop.f32.mrf.mxu0
    %v907 = vadd.f32 0.0, %v906
    %908 = vmatprep.mubr.bf16.mxu0 0
    %909 = vmatmul.mubr.bf16.gmra.mxu0 %v104
    %v910 = vpop.f32.mrf.mxu0
    %v911 = vadd.f32 0.0, %v910
    %v912 = vpop.f32.mrf.mxu0
    %v913 = vadd.f32 0.0, %v912
    %v914 = vpop.f32.mrf.mxu0
    %v915 = vadd.f32 0.0, %v914
    %v916 = vpop.f32.mrf.mxu0
    %v917 = vadd.f32 0.0, %v916
    %918 = vdwg.mxu0
    %v919 = vpack.c.bf16 %v905, %v901
    %v920 = vpack.c.bf16 %v907, %v903
    %v921 = vpack.c.bf16 %v915, %v911
    %v922 = vpack.c.bf16 %v917, %v913
    %923 = vmatprep.subr.bf16.mxu0 0
    %924 = vmatpush1.bf16.msra.mxu0 0
    %925 = vmatprep.subr.bf16.mxu0 0
    %926 = vmatpush1.bf16.msra.mxu0 0
    %927 = vmatprep.subr.bf16.mxu0 0
    %928 = vmatpush1.bf16.msra.mxu0 0
    %929 = vmatprep.subr.bf16.mxu0 0
    %930 = vmatpush1.bf16.msra.mxu0 0
    %931 = vmatprep.subr.bf16.mxu0 0
    %932 = vmatpush1.bf16.msra.mxu0 0
    %933 = vmatprep.subr.bf16.mxu0 0
    %934 = vmatpush1.bf16.msra.mxu0 0
    %935 = vmatprep.subr.bf16.mxu0 %v716
    %936 = vmatpush1.bf16.msra.mxu0 %v715
    %937 = vmatprep.subr.bf16.mxu0 %v714
    %938 = vmatpush1.bf16.msra.mxu0 %v713
    %939 = vmatprep.subr.bf16.mxu0 0
    %940 = vmatpush2.bf16.msra.mxu0 0
    %941 = vmatprep.subr.bf16.mxu0 0
    %942 = vmatpush2.bf16.msra.mxu0 0
    %943 = vmatprep.subr.bf16.mxu0 0
    %944 = vmatpush2.bf16.msra.mxu0 0
    %945 = vmatprep.subr.bf16.mxu0 0
    %946 = vmatpush2.bf16.msra.mxu0 0
    %947 = vmatprep.subr.bf16.mxu0 0
    %948 = vmatpush2.bf16.msra.mxu0 0
    %949 = vmatprep.subr.bf16.mxu0 0
    %950 = vmatpush2.bf16.msra.mxu0 0
    %951 = vmatprep.subr.bf16.mxu0 0
    %952 = vmatpush2.bf16.msra.mxu0 0
    %953 = vmatprep.subr.bf16.mxu0 0
    %954 = vmatpush2.bf16.msra.mxu0 0
    %955 = vmatprep.mubr.bf16.mxu0 0
    %956 = vmatmul.mubr.bf16.gmra.mxu0 %v172
    %v957 = vpop.f32.mrf.mxu0
    %v958 = vadd.f32 0.0, %v957
    %v959 = vpop.f32.mrf.mxu0
    %v960 = vadd.f32 0.0, %v959
    %v961 = vpop.f32.mrf.mxu0
    %v962 = vadd.f32 0.0, %v961
    %v963 = vpop.f32.mrf.mxu0
    %v964 = vadd.f32 0.0, %v963
    %965 = vmatprep.mubr.bf16.mxu0 0
    %966 = vmatmul.mubr.bf16.gmra.mxu0 %v175
    %v967 = vpop.f32.mrf.mxu0
    %v968 = vadd.f32 0.0, %v967
    %v969 = vpop.f32.mrf.mxu0
    %v970 = vadd.f32 0.0, %v969
    %v971 = vpop.f32.mrf.mxu0
    %v972 = vadd.f32 0.0, %v971
    %v973 = vpop.f32.mrf.mxu0
    %v974 = vadd.f32 0.0, %v973
    %975 = vdwg.mxu0
    %v976 = vpack.c.bf16 %v962, %v958
    %v977 = vpack.c.bf16 %v964, %v960
    %v978 = vpack.c.bf16 %v972, %v968
    %v979 = vpack.c.bf16 %v974, %v970
    %s980 = scalar_lea.vmem %s3, 256
    %v981 = vld [vmem:[%s980] sm:$0xff]
    %v982 = vld [vmem:[%s980 + $0x8] sm:$0xff]
    %v983 = vld [vmem:[%s980 + $0x10] sm:$0xff]
    %v984 = vld [vmem:[%s980 + $0x18] sm:$0xff]
    %v985 = vld [vmem:[%s980 + $0x20] sm:$0xff]
    %v986 = vld [vmem:[%s980 + $0x28] sm:$0xff]
    %v987 = vld [vmem:[%s980 + $0x30] sm:$0xff]
    %v988 = vld [vmem:[%s980 + $0x38] sm:$0xff]
    %v989 = vld [vmem:[%s980 + $0x40] sm:$0xff]
    %v990 = vld [vmem:[%s980 + $0x48] sm:$0xff]
    %v991 = vld [vmem:[%s980 + $0x50] sm:$0xff]
    %v992 = vld [vmem:[%s980 + $0x58] sm:$0xff]
    %v993 = vld [vmem:[%s980 + $0x60] sm:$0xff]
    %v994 = vld [vmem:[%s980 + $0x68] sm:$0xff]
    %v995 = vld [vmem:[%s980 + $0x70] sm:$0xff]
    %v996 = vld [vmem:[%s980 + $0x78] sm:$0xff]
    %v997 = vld [vmem:[%s980 + $0x80] sm:$0xff]
    %v998 = vld [vmem:[%s980 + $0x88] sm:$0xff]
    %v999 = vld [vmem:[%s980 + $0x90] sm:$0xff]
    %v1000 = vld [vmem:[%s980 + $0x98] sm:$0xff]
    %v1001 = vld [vmem:[%s980 + $0xa0] sm:$0xff]
    %v1002 = vld [vmem:[%s980 + $0xa8] sm:$0xff]
    %v1003 = vld [vmem:[%s980 + $0xb0] sm:$0xff]
    %v1004 = vld [vmem:[%s980 + $0xb8] sm:$0xff]
    %v1005 = vld [vmem:[%s980 + $0xc0] sm:$0xff]
    %v1006 = vld [vmem:[%s980 + $0xc8] sm:$0xff]
    %v1007 = vld [vmem:[%s980 + $0xd0] sm:$0xff]
    %v1008 = vld [vmem:[%s980 + $0xd8] sm:$0xff]
    %v1009 = vld [vmem:[%s980 + $0xe0] sm:$0xff]
    %v1010 = vld [vmem:[%s980 + $0xe8] sm:$0xff]
    %v1011 = vld [vmem:[%s980 + $0xf0] sm:$0xff]
    %v1012 = vld [vmem:[%s980 + $0xf8] sm:$0xff]
    %v1013 = vld [vmem:[%s3] sm:$0xff]
    %v1014 = vld [vmem:[%s3 + $0x8] sm:$0xff]
    %v1015 = vld [vmem:[%s3 + $0x10] sm:$0xff]
    %v1016 = vld [vmem:[%s3 + $0x18] sm:$0xff]
    %v1017 = vld [vmem:[%s3 + $0x20] sm:$0xff]
    %v1018 = vld [vmem:[%s3 + $0x28] sm:$0xff]
    %v1019 = vld [vmem:[%s3 + $0x30] sm:$0xff]
    %v1020 = vld [vmem:[%s3 + $0x38] sm:$0xff]
    %v1021 = vld [vmem:[%s3 + $0x40] sm:$0xff]
    %v1022 = vld [vmem:[%s3 + $0x48] sm:$0xff]
    %v1023 = vld [vmem:[%s3 + $0x50] sm:$0xff]
    %v1024 = vld [vmem:[%s3 + $0x58] sm:$0xff]
    %v1025 = vld [vmem:[%s3 + $0x60] sm:$0xff]
    %v1026 = vld [vmem:[%s3 + $0x68] sm:$0xff]
    %v1027 = vld [vmem:[%s3 + $0x70] sm:$0xff]
    %v1028 = vld [vmem:[%s3 + $0x78] sm:$0xff]
    %v1029 = vld [vmem:[%s3 + $0x80] sm:$0xff]
    %v1030 = vld [vmem:[%s3 + $0x88] sm:$0xff]
    %v1031 = vld [vmem:[%s3 + $0x90] sm:$0xff]
    %v1032 = vld [vmem:[%s3 + $0x98] sm:$0xff]
    %v1033 = vld [vmem:[%s3 + $0xa0] sm:$0xff]
    %v1034 = vld [vmem:[%s3 + $0xa8] sm:$0xff]
    %v1035 = vld [vmem:[%s3 + $0xb0] sm:$0xff]
    %v1036 = vld [vmem:[%s3 + $0xb8] sm:$0xff]
    %v1037 = vld [vmem:[%s3 + $0xc0] sm:$0xff]
    %v1038 = vld [vmem:[%s3 + $0xc8] sm:$0xff]
    %v1039 = vld [vmem:[%s3 + $0xd0] sm:$0xff]
    %v1040 = vld [vmem:[%s3 + $0xd8] sm:$0xff]
    %v1041 = vld [vmem:[%s3 + $0xe0] sm:$0xff]
    %v1042 = vld [vmem:[%s3 + $0xe8] sm:$0xff]
    %v1043 = vld [vmem:[%s3 + $0xf0] sm:$0xff]
    %v1044 = vld [vmem:[%s3 + $0xf8] sm:$0xff]
    %v1077 = vunpack.c.l.b16 %v1013
    %v1078 = vunpack.c.h.b16 %v1013
    %v1079 = vunpack.c.l.b16 %v1014
    %v1080 = vunpack.c.h.b16 %v1014
    %v1081 = vunpack.c.l.b16 %v1015
    %v1082 = vunpack.c.h.b16 %v1015
    %v1083 = vunpack.c.l.b16 %v1016
    %v1084 = vunpack.c.h.b16 %v1016
    %v1085 = vunpack.c.l.b16 %v1017
    %v1086 = vunpack.c.h.b16 %v1017
    %v1087 = vunpack.c.l.b16 %v1018
    %v1088 = vunpack.c.h.b16 %v1018
    %v1089 = vunpack.c.l.b16 %v1019
    %v1090 = vunpack.c.h.b16 %v1019
    %v1091 = vunpack.c.l.b16 %v1020
    %v1092 = vunpack.c.h.b16 %v1020
    %v1093 = vunpack.c.l.b16 %v1021
    %v1094 = vunpack.c.h.b16 %v1021
    %v1095 = vunpack.c.l.b16 %v1022
    %v1096 = vunpack.c.h.b16 %v1022
    %v1097 = vunpack.c.l.b16 %v1023
    %v1098 = vunpack.c.h.b16 %v1023
    %v1099 = vunpack.c.l.b16 %v1024
    %v1100 = vunpack.c.h.b16 %v1024
    %v1101 = vunpack.c.l.b16 %v1025
    %v1102 = vunpack.c.h.b16 %v1025
    %v1103 = vunpack.c.l.b16 %v1026
    %v1104 = vunpack.c.h.b16 %v1026
    %v1105 = vunpack.c.l.b16 %v1027
    %v1106 = vunpack.c.h.b16 %v1027
    %v1107 = vunpack.c.l.b16 %v1028
    %v1108 = vunpack.c.h.b16 %v1028
    %v1109 = vunpack.c.l.b16 %v1029
    %v1110 = vunpack.c.h.b16 %v1029
    %v1111 = vunpack.c.l.b16 %v1030
    %v1112 = vunpack.c.h.b16 %v1030
    %v1113 = vunpack.c.l.b16 %v1031
    %v1114 = vunpack.c.h.b16 %v1031
    %v1115 = vunpack.c.l.b16 %v1032
    %v1116 = vunpack.c.h.b16 %v1032
    %v1117 = vunpack.c.l.b16 %v1033
    %v1118 = vunpack.c.h.b16 %v1033
    %v1119 = vunpack.c.l.b16 %v1034
    %v1120 = vunpack.c.h.b16 %v1034
    %v1121 = vunpack.c.l.b16 %v1035
    %v1122 = vunpack.c.h.b16 %v1035
    %v1123 = vunpack.c.l.b16 %v1036
    %v1124 = vunpack.c.h.b16 %v1036
    %v1125 = vunpack.c.l.b16 %v1037
    %v1126 = vunpack.c.h.b16 %v1037
    %v1127 = vunpack.c.l.b16 %v1038
    %v1128 = vunpack.c.h.b16 %v1038
    %v1129 = vunpack.c.l.b16 %v1039
    %v1130 = vunpack.c.h.b16 %v1039
    %v1131 = vunpack.c.l.b16 %v1040
    %v1132 = vunpack.c.h.b16 %v1040
    %v1133 = vunpack.c.l.b16 %v1041
    %v1134 = vunpack.c.h.b16 %v1041
    %v1135 = vunpack.c.l.b16 %v1042
    %v1136 = vunpack.c.h.b16 %v1042
    %v1137 = vunpack.c.l.b16 %v1043
    %v1138 = vunpack.c.h.b16 %v1043
    %v1139 = vunpack.c.l.b16 %v1044
    %v1140 = vunpack.c.h.b16 %v1044
    %v1141 = vpack.c.b16 %v1079, %v1077
    %v1142 = vpack.c.b16 %v1080, %v1078
    %v1143 = vpack.c.b16 %v1083, %v1081
    %v1144 = vpack.c.b16 %v1084, %v1082
    %v1145 = vpack.c.b16 %v1087, %v1085
    %v1146 = vpack.c.b16 %v1088, %v1086
    %v1147 = vpack.c.b16 %v1091, %v1089
    %v1148 = vpack.c.b16 %v1092, %v1090
    %v1149 = vpack.c.b16 %v1095, %v1093
    %v1150 = vpack.c.b16 %v1096, %v1094
    %v1151 = vpack.c.b16 %v1099, %v1097
    %v1152 = vpack.c.b16 %v1100, %v1098
    %v1153 = vpack.c.b16 %v1103, %v1101
    %v1154 = vpack.c.b16 %v1104, %v1102
    %v1155 = vpack.c.b16 %v1107, %v1105
    %v1156 = vpack.c.b16 %v1108, %v1106
    %v1157 = vpack.c.b16 %v1111, %v1109
    %v1158 = vpack.c.b16 %v1112, %v1110
    %v1159 = vpack.c.b16 %v1115, %v1113
    %v1160 = vpack.c.b16 %v1116, %v1114
    %v1161 = vpack.c.b16 %v1119, %v1117
    %v1162 = vpack.c.b16 %v1120, %v1118
    %v1163 = vpack.c.b16 %v1123, %v1121
    %v1164 = vpack.c.b16 %v1124, %v1122
    %v1165 = vpack.c.b16 %v1127, %v1125
    %v1166 = vpack.c.b16 %v1128, %v1126
    %v1167 = vpack.c.b16 %v1131, %v1129
    %v1168 = vpack.c.b16 %v1132, %v1130
    %v1169 = vpack.c.b16 %v1135, %v1133
    %v1170 = vpack.c.b16 %v1136, %v1134
    %v1171 = vpack.c.b16 %v1139, %v1137
    %v1172 = vpack.c.b16 %v1140, %v1138
    %1205 = vmatprep.subr.bf16.mxu0 %v1156
    %1206 = vmatpush1.bf16.msra.mxu0 %v1155
    %1207 = vmatprep.subr.bf16.mxu0 %v1154
    %1208 = vmatpush1.bf16.msra.mxu0 %v1153
    %1209 = vmatprep.subr.bf16.mxu0 %v1152
    %1210 = vmatpush1.bf16.msra.mxu0 %v1151
    %1211 = vmatprep.subr.bf16.mxu0 %v1150
    %1212 = vmatpush1.bf16.msra.mxu0 %v1149
    %1213 = vmatprep.subr.bf16.mxu0 %v1148
    %1214 = vmatpush1.bf16.msra.mxu0 %v1147
    %1215 = vmatprep.subr.bf16.mxu0 %v1146
    %1216 = vmatpush1.bf16.msra.mxu0 %v1145
    %1217 = vmatprep.subr.bf16.mxu0 %v1144
    %1218 = vmatpush1.bf16.msra.mxu0 %v1143
    %1219 = vmatprep.subr.bf16.mxu0 %v1142
    %1220 = vmatpush1.bf16.msra.mxu0 %v1141
    %1221 = vmatprep.subr.bf16.mxu0 %v1172
    %1222 = vmatpush2.bf16.msra.mxu0 %v1171
    %1223 = vmatprep.subr.bf16.mxu0 %v1170
    %1224 = vmatpush2.bf16.msra.mxu0 %v1169
    %1225 = vmatprep.subr.bf16.mxu0 %v1168
    %1226 = vmatpush2.bf16.msra.mxu0 %v1167
    %1227 = vmatprep.subr.bf16.mxu0 %v1166
    %1228 = vmatpush2.bf16.msra.mxu0 %v1165
    %1229 = vmatprep.subr.bf16.mxu0 %v1164
    %1230 = vmatpush2.bf16.msra.mxu0 %v1163
    %1231 = vmatprep.subr.bf16.mxu0 %v1162
    %1232 = vmatpush2.bf16.msra.mxu0 %v1161
    %1233 = vmatprep.subr.bf16.mxu0 %v1160
    %1234 = vmatpush2.bf16.msra.mxu0 %v1159
    %1235 = vmatprep.subr.bf16.mxu0 %v1158
    %1236 = vmatpush2.bf16.msra.mxu0 %v1157
    %1237 = vmatprep.mubr.bf16.mxu0 %v920
    %1238 = vmatmul.mubr.bf16.gmra.mxu0 %v919
    %v1239 = vpop.f32.mrf.mxu0
    %v1240 = vadd.f32 0.0, %v1239
    %v1241 = vpop.f32.mrf.mxu0
    %v1242 = vadd.f32 0.0, %v1241
    %v1243 = vpop.f32.mrf.mxu0
    %v1244 = vadd.f32 0.0, %v1243
    %v1245 = vpop.f32.mrf.mxu0
    %v1246 = vadd.f32 0.0, %v1245
    %1247 = vmatprep.mubr.bf16.mxu0 %v922
    %1248 = vmatmul.mubr.bf16.gmra.mxu0 %v921
    %v1249 = vpop.f32.mrf.mxu0
    %v1250 = vadd.f32 0.0, %v1249
    %v1251 = vpop.f32.mrf.mxu0
    %v1252 = vadd.f32 0.0, %v1251
    %v1253 = vpop.f32.mrf.mxu0
    %v1254 = vadd.f32 0.0, %v1253
    %v1255 = vpop.f32.mrf.mxu0
    %v1256 = vadd.f32 0.0, %v1255
    %1257 = vdwg.mxu0
    %v1290 = vunpack.c.l.b16 %v981
    %v1291 = vunpack.c.h.b16 %v981
    %v1292 = vunpack.c.l.b16 %v982
    %v1293 = vunpack.c.h.b16 %v982
    %v1294 = vunpack.c.l.b16 %v983
    %v1295 = vunpack.c.h.b16 %v983
    %v1296 = vunpack.c.l.b16 %v984
    %v1297 = vunpack.c.h.b16 %v984
    %v1298 = vunpack.c.l.b16 %v985
    %v1299 = vunpack.c.h.b16 %v985
    %v1300 = vunpack.c.l.b16 %v986
    %v1301 = vunpack.c.h.b16 %v986
    %v1302 = vunpack.c.l.b16 %v987
    %v1303 = vunpack.c.h.b16 %v987
    %v1304 = vunpack.c.l.b16 %v988
    %v1305 = vunpack.c.h.b16 %v988
    %v1306 = vunpack.c.l.b16 %v989
    %v1307 = vunpack.c.h.b16 %v989
    %v1308 = vunpack.c.l.b16 %v990
    %v1309 = vunpack.c.h.b16 %v990
    %v1310 = vunpack.c.l.b16 %v991
    %v1311 = vunpack.c.h.b16 %v991
    %v1312 = vunpack.c.l.b16 %v992
    %v1313 = vunpack.c.h.b16 %v992
    %v1314 = vunpack.c.l.b16 %v993
    %v1315 = vunpack.c.h.b16 %v993
    %v1316 = vunpack.c.l.b16 %v994
    %v1317 = vunpack.c.h.b16 %v994
    %v1318 = vunpack.c.l.b16 %v995
    %v1319 = vunpack.c.h.b16 %v995
    %v1320 = vunpack.c.l.b16 %v996
    %v1321 = vunpack.c.h.b16 %v996
    %v1322 = vunpack.c.l.b16 %v997
    %v1323 = vunpack.c.h.b16 %v997
    %v1324 = vunpack.c.l.b16 %v998
    %v1325 = vunpack.c.h.b16 %v998
    %v1326 = vunpack.c.l.b16 %v999
    %v1327 = vunpack.c.h.b16 %v999
    %v1328 = vunpack.c.l.b16 %v1000
    %v1329 = vunpack.c.h.b16 %v1000
    %v1330 = vunpack.c.l.b16 %v1001
    %v1331 = vunpack.c.h.b16 %v1001
    %v1332 = vunpack.c.l.b16 %v1002
    %v1333 = vunpack.c.h.b16 %v1002
    %v1334 = vunpack.c.l.b16 %v1003
    %v1335 = vunpack.c.h.b16 %v1003
    %v1336 = vunpack.c.l.b16 %v1004
    %v1337 = vunpack.c.h.b16 %v1004
    %v1338 = vunpack.c.l.b16 %v1005
    %v1339 = vunpack.c.h.b16 %v1005
    %v1340 = vunpack.c.l.b16 %v1006
    %v1341 = vunpack.c.h.b16 %v1006
    %v1342 = vunpack.c.l.b16 %v1007
    %v1343 = vunpack.c.h.b16 %v1007
    %v1344 = vunpack.c.l.b16 %v1008
    %v1345 = vunpack.c.h.b16 %v1008
    %v1346 = vunpack.c.l.b16 %v1009
    %v1347 = vunpack.c.h.b16 %v1009
    %v1348 = vunpack.c.l.b16 %v1010
    %v1349 = vunpack.c.h.b16 %v1010
    %v1350 = vunpack.c.l.b16 %v1011
    %v1351 = vunpack.c.h.b16 %v1011
    %v1352 = vunpack.c.l.b16 %v1012
    %v1353 = vunpack.c.h.b16 %v1012
    %v1354 = vpack.c.b16 %v1292, %v1290
    %v1355 = vpack.c.b16 %v1293, %v1291
    %v1356 = vpack.c.b16 %v1296, %v1294
    %v1357 = vpack.c.b16 %v1297, %v1295
    %v1358 = vpack.c.b16 %v1300, %v1298
    %v1359 = vpack.c.b16 %v1301, %v1299
    %v1360 = vpack.c.b16 %v1304, %v1302
    %v1361 = vpack.c.b16 %v1305, %v1303
    %v1362 = vpack.c.b16 %v1308, %v1306
    %v1363 = vpack.c.b16 %v1309, %v1307
    %v1364 = vpack.c.b16 %v1312, %v1310
    %v1365 = vpack.c.b16 %v1313, %v1311
    %v1366 = vpack.c.b16 %v1316, %v1314
    %v1367 = vpack.c.b16 %v1317, %v1315
    %v1368 = vpack.c.b16 %v1320, %v1318
    %v1369 = vpack.c.b16 %v1321, %v1319
    %v1370 = vpack.c.b16 %v1324, %v1322
    %v1371 = vpack.c.b16 %v1325, %v1323
    %v1372 = vpack.c.b16 %v1328, %v1326
    %v1373 = vpack.c.b16 %v1329, %v1327
    %v1374 = vpack.c.b16 %v1332, %v1330
    %v1375 = vpack.c.b16 %v1333, %v1331
    %v1376 = vpack.c.b16 %v1336, %v1334
    %v1377 = vpack.c.b16 %v1337, %v1335
    %v1378 = vpack.c.b16 %v1340, %v1338
    %v1379 = vpack.c.b16 %v1341, %v1339
    %v1380 = vpack.c.b16 %v1344, %v1342
    %v1381 = vpack.c.b16 %v1345, %v1343
    %v1382 = vpack.c.b16 %v1348, %v1346
    %v1383 = vpack.c.b16 %v1349, %v1347
    %v1384 = vpack.c.b16 %v1352, %v1350
    %v1385 = vpack.c.b16 %v1353, %v1351
    %1418 = vmatprep.subr.bf16.mxu0 %v1369
    %1419 = vmatpush1.bf16.msra.mxu0 %v1368
    %1420 = vmatprep.subr.bf16.mxu0 %v1367
    %1421 = vmatpush1.bf16.msra.mxu0 %v1366
    %1422 = vmatprep.subr.bf16.mxu0 %v1365
    %1423 = vmatpush1.bf16.msra.mxu0 %v1364
    %1424 = vmatprep.subr.bf16.mxu0 %v1363
    %1425 = vmatpush1.bf16.msra.mxu0 %v1362
    %1426 = vmatprep.subr.bf16.mxu0 %v1361
    %1427 = vmatpush1.bf16.msra.mxu0 %v1360
    %1428 = vmatprep.subr.bf16.mxu0 %v1359
    %1429 = vmatpush1.bf16.msra.mxu0 %v1358
    %1430 = vmatprep.subr.bf16.mxu0 %v1357
    %1431 = vmatpush1.bf16.msra.mxu0 %v1356
    %1432 = vmatprep.subr.bf16.mxu0 %v1355
    %1433 = vmatpush1.bf16.msra.mxu0 %v1354
    %1434 = vmatprep.subr.bf16.mxu0 %v1385
    %1435 = vmatpush2.bf16.msra.mxu0 %v1384
    %1436 = vmatprep.subr.bf16.mxu0 %v1383
    %1437 = vmatpush2.bf16.msra.mxu0 %v1382
    %1438 = vmatprep.subr.bf16.mxu0 %v1381
    %1439 = vmatpush2.bf16.msra.mxu0 %v1380
    %1440 = vmatprep.subr.bf16.mxu0 %v1379
    %1441 = vmatpush2.bf16.msra.mxu0 %v1378
    %1442 = vmatprep.subr.bf16.mxu0 %v1377
    %1443 = vmatpush2.bf16.msra.mxu0 %v1376
    %1444 = vmatprep.subr.bf16.mxu0 %v1375
    %1445 = vmatpush2.bf16.msra.mxu0 %v1374
    %1446 = vmatprep.subr.bf16.mxu0 %v1373
    %1447 = vmatpush2.bf16.msra.mxu0 %v1372
    %1448 = vmatprep.subr.bf16.mxu0 %v1371
    %1449 = vmatpush2.bf16.msra.mxu0 %v1370
    %1450 = vmatprep.mubr.bf16.mxu0 %v714
    %1451 = vmatmul.mubr.bf16.gmra.mxu0 %v713
    %v1452 = vpop.f32.mrf.mxu0
    %v1453 = vadd.f32 %v1240, %v1452
    %v1454 = vpop.f32.mrf.mxu0
    %v1455 = vadd.f32 %v1242, %v1454
    %v1456 = vpop.f32.mrf.mxu0
    %v1457 = vadd.f32 %v1244, %v1456
    %v1458 = vpop.f32.mrf.mxu0
    %v1459 = vadd.f32 %v1246, %v1458
    %1460 = vmatprep.mubr.bf16.mxu0 %v716
    %1461 = vmatmul.mubr.bf16.gmra.mxu0 %v715
    %v1462 = vpop.f32.mrf.mxu0
    %v1463 = vadd.f32 %v1250, %v1462
    %v1464 = vpop.f32.mrf.mxu0
    %v1465 = vadd.f32 %v1252, %v1464
    %v1466 = vpop.f32.mrf.mxu0
    %v1467 = vadd.f32 %v1254, %v1466
    %v1468 = vpop.f32.mrf.mxu0
    %v1469 = vadd.f32 %v1256, %v1468
    %1470 = vdwg.mxu0
    %s1471 = scalar_lea.vmem %s3, 512
    %v1472 = vld [vmem:[%s1471] sm:$0xff]
    %v1473 = vld [vmem:[%s1471 + $0x8] sm:$0xff]
    %v1474 = vld [vmem:[%s1471 + $0x10] sm:$0xff]
    %v1475 = vld [vmem:[%s1471 + $0x18] sm:$0xff]
    %v1476 = vld [vmem:[%s1471 + $0x20] sm:$0xff]
    %v1477 = vld [vmem:[%s1471 + $0x28] sm:$0xff]
    %v1478 = vld [vmem:[%s1471 + $0x30] sm:$0xff]
    %v1479 = vld [vmem:[%s1471 + $0x38] sm:$0xff]
    %v1480 = vld [vmem:[%s1471 + $0x40] sm:$0xff]
    %v1481 = vld [vmem:[%s1471 + $0x48] sm:$0xff]
    %v1482 = vld [vmem:[%s1471 + $0x50] sm:$0xff]
    %v1483 = vld [vmem:[%s1471 + $0x58] sm:$0xff]
    %v1484 = vld [vmem:[%s1471 + $0x60] sm:$0xff]
    %v1485 = vld [vmem:[%s1471 + $0x68] sm:$0xff]
    %v1486 = vld [vmem:[%s1471 + $0x70] sm:$0xff]
    %v1487 = vld [vmem:[%s1471 + $0x78] sm:$0xff]
    %v1488 = vld [vmem:[%s1471 + $0x80] sm:$0xff]
    %v1489 = vld [vmem:[%s1471 + $0x88] sm:$0xff]
    %v1490 = vld [vmem:[%s1471 + $0x90] sm:$0xff]
    %v1491 = vld [vmem:[%s1471 + $0x98] sm:$0xff]
    %v1492 = vld [vmem:[%s1471 + $0xa0] sm:$0xff]
    %v1493 = vld [vmem:[%s1471 + $0xa8] sm:$0xff]
    %v1494 = vld [vmem:[%s1471 + $0xb0] sm:$0xff]
    %v1495 = vld [vmem:[%s1471 + $0xb8] sm:$0xff]
    %v1496 = vld [vmem:[%s1471 + $0xc0] sm:$0xff]
    %v1497 = vld [vmem:[%s1471 + $0xc8] sm:$0xff]
    %v1498 = vld [vmem:[%s1471 + $0xd0] sm:$0xff]
    %v1499 = vld [vmem:[%s1471 + $0xd8] sm:$0xff]
    %v1500 = vld [vmem:[%s1471 + $0xe0] sm:$0xff]
    %v1501 = vld [vmem:[%s1471 + $0xe8] sm:$0xff]
    %v1502 = vld [vmem:[%s1471 + $0xf0] sm:$0xff]
    %v1503 = vld [vmem:[%s1471 + $0xf8] sm:$0xff]
    %v1536 = vunpack.c.l.b16 %v1472
    %v1537 = vunpack.c.h.b16 %v1472
    %v1538 = vunpack.c.l.b16 %v1473
    %v1539 = vunpack.c.h.b16 %v1473
    %v1540 = vunpack.c.l.b16 %v1474
    %v1541 = vunpack.c.h.b16 %v1474
    %v1542 = vunpack.c.l.b16 %v1475
    %v1543 = vunpack.c.h.b16 %v1475
    %v1544 = vunpack.c.l.b16 %v1476
    %v1545 = vunpack.c.h.b16 %v1476
    %v1546 = vunpack.c.l.b16 %v1477
    %v1547 = vunpack.c.h.b16 %v1477
    %v1548 = vunpack.c.l.b16 %v1478
    %v1549 = vunpack.c.h.b16 %v1478
    %v1550 = vunpack.c.l.b16 %v1479
    %v1551 = vunpack.c.h.b16 %v1479
    %v1552 = vunpack.c.l.b16 %v1480
    %v1553 = vunpack.c.h.b16 %v1480
    %v1554 = vunpack.c.l.b16 %v1481
    %v1555 = vunpack.c.h.b16 %v1481
    %v1556 = vunpack.c.l.b16 %v1482
    %v1557 = vunpack.c.h.b16 %v1482
    %v1558 = vunpack.c.l.b16 %v1483
    %v1559 = vunpack.c.h.b16 %v1483
    %v1560 = vunpack.c.l.b16 %v1484
    %v1561 = vunpack.c.h.b16 %v1484
    %v1562 = vunpack.c.l.b16 %v1485
    %v1563 = vunpack.c.h.b16 %v1485
    %v1564 = vunpack.c.l.b16 %v1486
    %v1565 = vunpack.c.h.b16 %v1486
    %v1566 = vunpack.c.l.b16 %v1487
    %v1567 = vunpack.c.h.b16 %v1487
    %v1568 = vunpack.c.l.b16 %v1488
    %v1569 = vunpack.c.h.b16 %v1488
    %v1570 = vunpack.c.l.b16 %v1489
    %v1571 = vunpack.c.h.b16 %v1489
    %v1572 = vunpack.c.l.b16 %v1490
    %v1573 = vunpack.c.h.b16 %v1490
    %v1574 = vunpack.c.l.b16 %v1491
    %v1575 = vunpack.c.h.b16 %v1491
    %v1576 = vunpack.c.l.b16 %v1492
    %v1577 = vunpack.c.h.b16 %v1492
    %v1578 = vunpack.c.l.b16 %v1493
    %v1579 = vunpack.c.h.b16 %v1493
    %v1580 = vunpack.c.l.b16 %v1494
    %v1581 = vunpack.c.h.b16 %v1494
    %v1582 = vunpack.c.l.b16 %v1495
    %v1583 = vunpack.c.h.b16 %v1495
    %v1584 = vunpack.c.l.b16 %v1496
    %v1585 = vunpack.c.h.b16 %v1496
    %v1586 = vunpack.c.l.b16 %v1497
    %v1587 = vunpack.c.h.b16 %v1497
    %v1588 = vunpack.c.l.b16 %v1498
    %v1589 = vunpack.c.h.b16 %v1498
    %v1590 = vunpack.c.l.b16 %v1499
    %v1591 = vunpack.c.h.b16 %v1499
    %v1592 = vunpack.c.l.b16 %v1500
    %v1593 = vunpack.c.h.b16 %v1500
    %v1594 = vunpack.c.l.b16 %v1501
    %v1595 = vunpack.c.h.b16 %v1501
    %v1596 = vunpack.c.l.b16 %v1502
    %v1597 = vunpack.c.h.b16 %v1502
    %v1598 = vunpack.c.l.b16 %v1503
    %v1599 = vunpack.c.h.b16 %v1503
    %v1600 = vpack.c.b16 %v1538, %v1536
    %v1601 = vpack.c.b16 %v1539, %v1537
    %v1602 = vpack.c.b16 %v1542, %v1540
    %v1603 = vpack.c.b16 %v1543, %v1541
    %v1604 = vpack.c.b16 %v1546, %v1544
    %v1605 = vpack.c.b16 %v1547, %v1545
    %v1606 = vpack.c.b16 %v1550, %v1548
    %v1607 = vpack.c.b16 %v1551, %v1549
    %v1608 = vpack.c.b16 %v1554, %v1552
    %v1609 = vpack.c.b16 %v1555, %v1553
    %v1610 = vpack.c.b16 %v1558, %v1556
    %v1611 = vpack.c.b16 %v1559, %v1557
    %v1612 = vpack.c.b16 %v1562, %v1560
    %v1613 = vpack.c.b16 %v1563, %v1561
    %v1614 = vpack.c.b16 %v1566, %v1564
    %v1615 = vpack.c.b16 %v1567, %v1565
    %v1616 = vpack.c.b16 %v1570, %v1568
    %v1617 = vpack.c.b16 %v1571, %v1569
    %v1618 = vpack.c.b16 %v1574, %v1572
    %v1619 = vpack.c.b16 %v1575, %v1573
    %v1620 = vpack.c.b16 %v1578, %v1576
    %v1621 = vpack.c.b16 %v1579, %v1577
    %v1622 = vpack.c.b16 %v1582, %v1580
    %v1623 = vpack.c.b16 %v1583, %v1581
    %v1624 = vpack.c.b16 %v1586, %v1584
    %v1625 = vpack.c.b16 %v1587, %v1585
    %v1626 = vpack.c.b16 %v1590, %v1588
    %v1627 = vpack.c.b16 %v1591, %v1589
    %v1628 = vpack.c.b16 %v1594, %v1592
    %v1629 = vpack.c.b16 %v1595, %v1593
    %v1630 = vpack.c.b16 %v1598, %v1596
    %v1631 = vpack.c.b16 %v1599, %v1597
    %1664 = vmatprep.subr.bf16.mxu0 %v1615
    %1665 = vmatpush1.bf16.msra.mxu0 %v1614
    %1666 = vmatprep.subr.bf16.mxu0 %v1613
    %1667 = vmatpush1.bf16.msra.mxu0 %v1612
    %1668 = vmatprep.subr.bf16.mxu0 %v1611
    %1669 = vmatpush1.bf16.msra.mxu0 %v1610
    %1670 = vmatprep.subr.bf16.mxu0 %v1609
    %1671 = vmatpush1.bf16.msra.mxu0 %v1608
    %1672 = vmatprep.subr.bf16.mxu0 %v1607
    %1673 = vmatpush1.bf16.msra.mxu0 %v1606
    %1674 = vmatprep.subr.bf16.mxu0 %v1605
    %1675 = vmatpush1.bf16.msra.mxu0 %v1604
    %1676 = vmatprep.subr.bf16.mxu0 %v1603
    %1677 = vmatpush1.bf16.msra.mxu0 %v1602
    %1678 = vmatprep.subr.bf16.mxu0 %v1601
    %1679 = vmatpush1.bf16.msra.mxu0 %v1600
    %1680 = vmatprep.subr.bf16.mxu0 %v1631
    %1681 = vmatpush2.bf16.msra.mxu0 %v1630
    %1682 = vmatprep.subr.bf16.mxu0 %v1629
    %1683 = vmatpush2.bf16.msra.mxu0 %v1628
    %1684 = vmatprep.subr.bf16.mxu0 %v1627
    %1685 = vmatpush2.bf16.msra.mxu0 %v1626
    %1686 = vmatprep.subr.bf16.mxu0 %v1625
    %1687 = vmatpush2.bf16.msra.mxu0 %v1624
    %1688 = vmatprep.subr.bf16.mxu0 %v1623
    %1689 = vmatpush2.bf16.msra.mxu0 %v1622
    %1690 = vmatprep.subr.bf16.mxu0 %v1621
    %1691 = vmatpush2.bf16.msra.mxu0 %v1620
    %1692 = vmatprep.subr.bf16.mxu0 %v1619
    %1693 = vmatpush2.bf16.msra.mxu0 %v1618
    %1694 = vmatprep.subr.bf16.mxu0 %v1617
    %1695 = vmatpush2.bf16.msra.mxu0 %v1616
    %1696 = vmatprep.mubr.bf16.mxu0 %v977
    %1697 = vmatmul.mubr.bf16.gmra.mxu0 %v976
    %v1698 = vpop.f32.mrf.mxu0
    %v1699 = vadd.f32 0.0, %v1698
    %v1700 = vpop.f32.mrf.mxu0
    %v1701 = vadd.f32 0.0, %v1700
    %v1702 = vpop.f32.mrf.mxu0
    %v1703 = vadd.f32 0.0, %v1702
    %v1704 = vpop.f32.mrf.mxu0
    %v1705 = vadd.f32 0.0, %v1704
    %1706 = vmatprep.mubr.bf16.mxu0 %v979
    %1707 = vmatmul.mubr.bf16.gmra.mxu0 %v978
    %v1708 = vpop.f32.mrf.mxu0
    %v1709 = vadd.f32 0.0, %v1708
    %v1710 = vpop.f32.mrf.mxu0
    %v1711 = vadd.f32 0.0, %v1710
    %v1712 = vpop.f32.mrf.mxu0
    %v1713 = vadd.f32 0.0, %v1712
    %v1714 = vpop.f32.mrf.mxu0
    %v1715 = vadd.f32 0.0, %v1714
    %1716 = vdwg.mxu0
    %v1717 = vadd.f32 %v1453, %v1699
    %v1718 = vadd.f32 %v1455, %v1701
    %v1719 = vadd.f32 %v1457, %v1703
    %v1720 = vadd.f32 %v1459, %v1705
    %v1721 = vadd.f32 %v1463, %v1709
    %v1722 = vadd.f32 %v1465, %v1711
    %v1723 = vadd.f32 %v1467, %v1713
    %v1724 = vadd.f32 %v1469, %v1715
    %v1725 = vld [vmem:[#allocation4] sm:$0x3]
    %v1727 = vlaneseq
    %v1728 = vshrl.u32 %v1727, 7
    %v1729 = vsub.s32 0, %v1728
    %v1730 = vrot.slane %v1725, %v1729
    %v1731 = vlaneseq
    %v1732 = vshrl.u32 %v1731, 7
    %v1733 = vsub.s32 1, %v1732
    %v1734 = vrot.slane %v1725, %v1733
    %v1737 = vadd.f32 %v1717, %v1730
    %v1738 = vadd.f32 %v1718, %v1734
    %v1739 = vadd.f32 %v1719, %v1730
    %v1740 = vadd.f32 %v1720, %v1734
    %v1741 = vadd.f32 %v1721, %v1730
    %v1742 = vadd.f32 %v1722, %v1734
    %v1743 = vadd.f32 %v1723, %v1730
    %v1744 = vadd.f32 %v1724, %v1734
    %v1745 = vadd.f32 %v1737, %v848
    %v1746 = vadd.f32 %v1738, %v850
    %v1747 = vadd.f32 %v1739, %v852
    %v1748 = vadd.f32 %v1740, %v854
    %v1749 = vadd.f32 %v1741, %v858
    %v1750 = vadd.f32 %v1742, %v860
    %v1751 = vadd.f32 %v1743, %v862
    %v1752 = vadd.f32 %v1744, %v864
    %v1753 = vmax.f32 %v1745, 0.0
    %v1754 = vmax.f32 %v1746, 0.0
    %v1755 = vmax.f32 %v1747, 0.0
    %v1756 = vmax.f32 %v1748, 0.0
    %v1757 = vmax.f32 %v1749, 0.0
    %v1758 = vmax.f32 %v1750, 0.0
    %v1759 = vmax.f32 %v1751, 0.0
    %v1760 = vmax.f32 %v1752, 0.0
    %v1761 = vpack.c.bf16 %v1755, %v1753
    %v1762 = vpack.c.bf16 %v1756, %v1754
    %v1763 = vpack.c.bf16 %v1759, %v1757
    %v1764 = vpack.c.bf16 %v1760, %v1758
    %v1769 = vunpack.c.l.b16 %v1761
    %v1770 = vunpack.c.l.b16 %v1762
    %v1771 = vunpack.c.h.b16 %v1761
    %v1772 = vunpack.c.h.b16 %v1762
    %v1773 = vunpack.c.l.b16 %v1763
    %v1774 = vunpack.c.l.b16 %v1764
    %v1775 = vunpack.c.h.b16 %v1763
    %v1776 = vunpack.c.h.b16 %v1764
    %v1777 = vpack.c.b16 %v1770, %v1769
    %v1778 = vpack.c.b16 %v1772, %v1771
    %v1779 = vpack.c.b16 %v1774, %v1773
    %v1780 = vpack.c.b16 %v1776, %v1775
    %1785 = vst [vmem:[%s8] sm:$0xff] %v1777
    %1786 = vst [vmem:[%s8 + $0x8] sm:$0xff] %v1778
    %1787 = vst [vmem:[%s8 + $0x10] sm:$0xff] %v1779
    %1788 = vst [vmem:[%s8 + $0x18] sm:$0xff] %v1780
    // Predicated region
    $region46: #{basic_block_forward_nchw.1} parent=1 // pred_check
      _
    $region47: #{basic_block_forward_nchw.1} parent=1 // pred_check_branch
      %1790 = sbr.rel (0) target = $region49
    $region48: #{basic_block_forward_nchw.1} parent=1 // pred_region
      _
    $region49: #{basic_block_forward_nchw.1} parent=1 // pred_fallthru
      _
    // Predicated region
    $region50: #{basic_block_forward_nchw.1} parent=1 // pred_check
      _
    $region51: #{basic_block_forward_nchw.1} parent=1 // pred_check_branch
      %1792 = sbr.rel (0) target = $region53
    $region52: #{basic_block_forward_nchw.1} parent=1 // pred_region
      _
    $region53: #{basic_block_forward_nchw.1} parent=1 // pred_fallthru
      _
    %1793 = vsyncpa [#allocation3], 1
    %1794 = vsyncpa [#allocation5], 1

</llo_original>
